<compile_context>
chip_gen: v5e
topology: v5e:2x2
jax: 0.10.0
libtpu: 0.0.40
codegen_flags: <defaults>
</compile_context>

<pallas_src>
import functools

import jax
import jax.numpy as jnp
from jax.experimental import pallas as pl
from jax.experimental.pallas import tpu as pltpu


def _convlstm_kernel(wp_ref, w_ref, b_ref, c_ref, hc_ref, *, width):
    """One batch image.

    wp_ref: (1, (H+2*ph)*W, Kpad)  width-unrolled patches (bf16)
    w_ref:  (kH, Kpad, 4*hid)      per-tap conv weights   (bf16)
    b_ref:  (1, 4*hid)             bias, +1.0 already folded into f gate (f32)
    c_ref:  (1, H*W, hid)          current cell state     (f32)
    hc_ref: (1, H*W, 2*hid)        output [h_next | c_next] (f32)
    """
    hw = c_ref.shape[1]
    hid = c_ref.shape[2]
    kh = w_ref.shape[0]

    # Convolution: kH accumulated bf16 MXU matmuls, f32 accumulation.
    z = jnp.broadcast_to(b_ref[...], (hw, 4 * hid))
    for ky in range(kh):                                    # static unroll
        tap = wp_ref[0, ky * width:ky * width + hw, :]      # (HW, Kpad) bf16
        z = z + jnp.dot(tap, w_ref[ky], preferred_element_type=jnp.float32)

    # Full-width activations: sigmoid for i/f/o lanes, tanh for g lanes.
    lane = jax.lax.broadcasted_iota(jnp.int32, z.shape, 1)
    act = jnp.where(lane < 3 * hid, jax.nn.sigmoid(z), jnp.tanh(z))

    i = act[:, 0 * hid:1 * hid]
    f = act[:, 1 * hid:2 * hid]
    o = act[:, 2 * hid:3 * hid]
    g = act[:, 3 * hid:4 * hid]

    c_cur = c_ref[0]
    c_next = f * c_cur + i * g
    h_next = o * jnp.tanh(c_next)

    hc_ref[0] = jnp.concatenate([h_next, c_next], axis=-1).astype(hc_ref.dtype)


def convlstm_cell_forward(x_nchw, h_nchw, c_nchw, w_hwio, bias, kernel_size):
    """ConvLSTMCell.forward.

    x_nchw: (B, Cin,  H, W)
    h_nchw: (B, Chid, H, W)
    c_nchw: (B, Chid, H, W)
    w_hwio: (kH, kW, Cin+Chid, 4*Chid)   conv weight (HWIO layout)
    bias:   (4*Chid,)
    Returns (h_next, c_next) in NCHW, matching PyTorch.
    """
    kH, kW = kernel_size
    assert kH % 2 == 1 and kW % 2 == 1, "odd kernel sizes only (SAME padding)"
    ph, pw = kH // 2, kW // 2
    B, Cin, H, W = x_nchw.shape
    Chid = h_nchw.shape[1]
    C = Cin + Chid
    hid4 = 4 * Chid
    HW = H * W
    Hp = H + 2 * ph

    # --- glue: NCHW -> NHWC, concat, pad, width-only patch unroll ----------
    x = jnp.transpose(x_nchw, (0, 2, 3, 1))
    h = jnp.transpose(h_nchw, (0, 2, 3, 1))
    c = jnp.transpose(c_nchw, (0, 2, 3, 1))

    combined = jnp.concatenate([x, h], axis=-1)                   # (B,H,W,C)
    padded = jnp.pad(combined, ((0, 0), (ph, ph), (pw, pw), (0, 0)))

    # wp[b, yp, x, kx*C + c] = padded[b, yp, x + kx, c]
    wp = jnp.concatenate([padded[:, :, kx:kx + W, :] for kx in range(kW)],
                         axis=-1)                                 # (B,Hp,W,kW*C)
    K = kW * C
    Kpad = ((K + 127) // 128) * 128
    wp = wp.reshape(B, Hp * W, K)
    wp = jnp.pad(wp, ((0, 0), (0, 0), (0, Kpad - K))).astype(jnp.bfloat16)

    # per-tap weights, contraction zero-padded to Kpad, bf16 for the MXU
    w_taps = w_hwio.reshape(kH, K, hid4)
    w_taps = jnp.pad(w_taps, ((0, 0), (0, Kpad - K), (0, 0))).astype(jnp.bfloat16)

    # forget-gate +1.0 folded into bias -> full-width gate activation in-kernel
    b_adj = bias.astype(jnp.float32)
    b_adj = b_adj.at[Chid:2 * Chid].add(1.0)
    b_adj = b_adj.reshape(1, hid4)

    c_flat = c.reshape(B, HW, Chid).astype(jnp.float32)

    # --- VMEM budget -> vmem_limit_bytes (v7x physical VMEM is 64 MiB) ------
    block_bytes = (2 * (Hp * W * Kpad * 2)        # wp block, double-buffered
                   + 2 * (HW * Chid * 4)          # c block, double-buffered
                   + 2 * (HW * 2 * Chid * 4)      # hc out, double-buffered
                   + kH * Kpad * hid4 * 2         # resident weights
                   + hid4 * 4)                    # bias
    vmem_limit = int(min(64 * 1024 * 1024, max(16 * 1024 * 1024, 4 * block_bytes)))
    # TODO(synk): tile over H (with halo rows) if (H+2*ph)*W*Kpad ever exceeds
    # the VMEM budget; the CRNN-HU2013 spatial sizes fit comfortably per image.

    kernel = functools.partial(_convlstm_kernel, width=W)

    hc = pl.pallas_call(
        kernel,
        out_shape=jax.ShapeDtypeStruct((B, HW, 2 * Chid), jnp.float32),
        grid_spec=pltpu.PrefetchScalarGridSpec(
            num_scalar_prefetch=0,
            grid=(B,),
            in_specs=[
                pl.BlockSpec((1, Hp * W, Kpad), lambda b: (b, 0, 0)),
                pl.BlockSpec((kH, Kpad, hid4), lambda b: (0, 0, 0)),
                pl.BlockSpec((1, hid4), lambda b: (0, 0)),
                pl.BlockSpec((1, HW, Chid), lambda b: (b, 0, 0)),
            ],
            out_specs=pl.BlockSpec((1, HW, 2 * Chid), lambda b: (b, 0, 0)),
        ),
        compiler_params=pltpu.CompilerParams(
            dimension_semantics=("parallel",),
            vmem_limit_bytes=vmem_limit),
    )(wp, w_taps, b_adj, c_flat)

    # --- glue: split fused output, back to NCHW -----------------------------
    h_next = jnp.transpose(hc[:, :, :Chid].reshape(B, H, W, Chid), (0, 3, 1, 2))
    c_next = jnp.transpose(hc[:, :, Chid:].reshape(B, H, W, Chid), (0, 3, 1, 2))
    return h_next, c_next


def _reference_forward(x_nchw, h_nchw, c_nchw, w_hwio, bias):
    """Pure-JAX f32 reference (lax conv) matching the PyTorch module semantics."""
    x = jnp.transpose(x_nchw, (0, 2, 3, 1))
    h = jnp.transpose(h_nchw, (0, 2, 3, 1))
    c = jnp.transpose(c_nchw, (0, 2, 3, 1))
    combined = jnp.concatenate([x, h], axis=-1)
    z = jax.lax.conv_general_dilated(
        combined, w_hwio, window_strides=(1, 1), padding="SAME",
        dimension_numbers=("NHWC", "HWIO", "NHWC")) + bias
    hid = c.shape[-1]
    cc_i, cc_f, cc_o, cc_g = jnp.split(z, 4, axis=-1)
    i = jax.nn.sigmoid(cc_i)
    f = jax.nn.sigmoid(cc_f + 1.0)
    o = jax.nn.sigmoid(cc_o)
    g = jnp.tanh(cc_g)
    c_next = f * c + i * g
    h_next = o * jnp.tanh(c_next)
    return (jnp.transpose(h_next, (0, 3, 1, 2)),
            jnp.transpose(c_next, (0, 3, 1, 2)))


if __name__ == "__main__":
    # Shapes consistent with the module: input_size=(16,16), input_dim=4,
    # hidden_dim=32, kernel_size=(3,3), bias=True, batch=2.
    B, Cin, H, W = 2, 4, 16, 16
    Chid = 32
    kH, kW = 3, 3

    key = jax.random.PRNGKey(0)
    kx, kh, kc, kw_, kb = jax.random.split(key, 5)

    x = jax.random.normal(kx, (B, Cin, H, W), dtype=jnp.float32)
    h_cur = jax.random.normal(kh, (B, Chid, H, W), dtype=jnp.float32)
    c_cur = jax.random.normal(kc, (B, Chid, H, W), dtype=jnp.float32)

    # Deterministic synthetic conv parameters (Conv2d: in=Cin+Chid, out=4*Chid).
    fan_in = (Cin + Chid) * kH * kW
    w_hwio = (jax.random.normal(kw_, (kH, kW, Cin + Chid, 4 * Chid), dtype=jnp.float32)
              * (1.0 / jnp.sqrt(fan_in)))
    bias = jax.random.normal(kb, (4 * Chid,), dtype=jnp.float32) * 0.1

    h_next, c_next = convlstm_cell_forward(x, h_cur, c_cur, w_hwio, bias, (kH, kW))
    jax.block_until_ready((h_next, c_next))

    # f32 reference; bf16 MXU inputs => loosened tolerance.
    h_ref, c_ref = _reference_forward(x, h_cur, c_cur, w_hwio, bias)
    assert jnp.allclose(h_next, h_ref, atol=5e-2, rtol=5e-2), "h_next mismatch"
    assert jnp.allclose(c_next, c_ref, atol=5e-2, rtol=5e-2), "c_next mismatch"

    print("KERNEL_OK")
</pallas_src>

<mosaic_0001>
module attributes {stable_mosaic.version = 11 : i64} {
  func.func @_convlstm_kernel(%arg0: i32, %arg1: memref<1x288x128xbf16, #tpu.memory_space<vmem>>, %arg2: memref<3x128x128xbf16, #tpu.memory_space<vmem>>, %arg3: memref<1x128xf32, #tpu.memory_space<vmem>>, %arg4: memref<1x256x32xf32, #tpu.memory_space<vmem>>, %arg5: memref<1x256x64xf32, #tpu.memory_space<vmem>>) attributes {dimension_semantics = [#tpu.dimension_semantics<parallel>], iteration_bounds = array<i64: 2>, scalar_prefetch = 0 : i64, scratch_operands = 0 : i64, tpu.core_type = #tpu.core_type<tc>, window_params = [{transform_indices = @transform_0, window_bounds = array<i64: 1, 288, 128>}, {pipeline_mode = #tpu.pipeline_mode<synchronous>, transform_indices = @transform_1, window_bounds = array<i64: 3, 128, 128>}, {pipeline_mode = #tpu.pipeline_mode<synchronous>, transform_indices = @transform_2, window_bounds = array<i64: 1, 128>}, {transform_indices = @transform_3, window_bounds = array<i64: 1, 256, 32>}, {transform_indices = @transform_4, window_bounds = array<i64: 1, 256, 64>}]} {
    %c0 = arith.constant 0 : index
    %c0_0 = arith.constant 0 : index
    %0 = vector.load %arg3[%c0, %c0_0] : memref<1x128xf32, #tpu.memory_space<vmem>>, vector<1x128xf32>
    %1 = vector.shape_cast %0 : vector<1x128xf32> to vector<1x128xf32>
    %2 = vector.broadcast %1 : vector<1x128xf32> to vector<256x128xf32>
    %c0_1 = arith.constant 0 : index
    %c0_2 = arith.constant 0 : index
    %c0_3 = arith.constant 0 : index
    %3 = vector.load %arg1[%c0_1, %c0_2, %c0_3] : memref<1x288x128xbf16, #tpu.memory_space<vmem>>, vector<1x256x128xbf16>
    %4 = vector.shape_cast %3 : vector<1x256x128xbf16> to vector<256x128xbf16>
    %c0_4 = arith.constant 0 : index
    %c0_5 = arith.constant 0 : index
    %c0_6 = arith.constant 0 : index
    %5 = vector.load %arg2[%c0_4, %c0_5, %c0_6] : memref<3x128x128xbf16, #tpu.memory_space<vmem>>, vector<1x128x128xbf16>
    %6 = vector.shape_cast %5 : vector<1x128x128xbf16> to vector<128x128xbf16>
    %cst = arith.constant dense<0.000000e+00> : vector<256x128xf32>
    %7 = tpu.matmul %4, %6, %cst {dimension_numbers = #tpu.dot_dimension_numbers<[1], [0], [0], [1], [0, 0, 1, 1], [], []>} : vector<256x128xbf16>, vector<128x128xbf16>, vector<256x128xf32> -> vector<256x128xf32>
    %8 = arith.addf %2, %7 : vector<256x128xf32>
    %c0_7 = arith.constant 0 : index
    %c16 = arith.constant 16 : index
    %c0_8 = arith.constant 0 : index
    %9 = vector.load %arg1[%c0_7, %c16, %c0_8] : memref<1x288x128xbf16, #tpu.memory_space<vmem>>, vector<1x256x128xbf16>
    %10 = vector.shape_cast %9 : vector<1x256x128xbf16> to vector<256x128xbf16>
    %c1 = arith.constant 1 : index
    %c0_9 = arith.constant 0 : index
    %c0_10 = arith.constant 0 : index
    %11 = vector.load %arg2[%c1, %c0_9, %c0_10] : memref<3x128x128xbf16, #tpu.memory_space<vmem>>, vector<1x128x128xbf16>
    %12 = vector.shape_cast %11 : vector<1x128x128xbf16> to vector<128x128xbf16>
    %cst_11 = arith.constant dense<0.000000e+00> : vector<256x128xf32>
    %13 = tpu.matmul %10, %12, %cst_11 {dimension_numbers = #tpu.dot_dimension_numbers<[1], [0], [0], [1], [0, 0, 1, 1], [], []>} : vector<256x128xbf16>, vector<128x128xbf16>, vector<256x128xf32> -> vector<256x128xf32>
    %14 = arith.addf %8, %13 : vector<256x128xf32>
    %c0_12 = arith.constant 0 : index
    %c32 = arith.constant 32 : index
    %c0_13 = arith.constant 0 : index
    %15 = vector.load %arg1[%c0_12, %c32, %c0_13] : memref<1x288x128xbf16, #tpu.memory_space<vmem>>, vector<1x256x128xbf16>
    %16 = vector.shape_cast %15 : vector<1x256x128xbf16> to vector<256x128xbf16>
    %c2 = arith.constant 2 : index
    %c0_14 = arith.constant 0 : index
    %c0_15 = arith.constant 0 : index
    %17 = vector.load %arg2[%c2, %c0_14, %c0_15] : memref<3x128x128xbf16, #tpu.memory_space<vmem>>, vector<1x128x128xbf16>
    %18 = vector.shape_cast %17 : vector<1x128x128xbf16> to vector<128x128xbf16>
    %cst_16 = arith.constant dense<0.000000e+00> : vector<256x128xf32>
    %19 = tpu.matmul %16, %18, %cst_16 {dimension_numbers = #tpu.dot_dimension_numbers<[1], [0], [0], [1], [0, 0, 1, 1], [], []>} : vector<256x128xbf16>, vector<128x128xbf16>, vector<256x128xf32> -> vector<256x128xf32>
    %20 = arith.addf %14, %19 : vector<256x128xf32>
    %21 = tpu.iota {dimensions = array<i32: 1>} : vector<256x128xi32>
    %c96_i32 = arith.constant 96 : i32
    %22 = vector.broadcast %c96_i32 : i32 to vector<256x128xi32>
    %23 = arith.cmpi slt, %21, %22 : vector<256x128xi32>
    %24 = arith.negf %20 : vector<256x128xf32>
    %25 = math.exp %24 : vector<256x128xf32>
    %cst_17 = arith.constant 1.000000e+00 : f32
    %26 = vector.broadcast %cst_17 : f32 to vector<256x128xf32>
    %27 = arith.addf %26, %25 : vector<256x128xf32>
    %28 = arith.divf %26, %27 : vector<256x128xf32>
    %29 = math.tanh %20 : vector<256x128xf32>
    %30 = arith.select %23, %28, %29 : vector<256x128xi1>, vector<256x128xf32>
    %31 = vector.extract_strided_slice %30 {offsets = [0, 0], sizes = [256, 32], strides = [1, 1]} : vector<256x128xf32> to vector<256x32xf32>
    %32 = vector.extract_strided_slice %30 {offsets = [0, 32], sizes = [256, 32], strides = [1, 1]} : vector<256x128xf32> to vector<256x32xf32>
    %33 = vector.extract_strided_slice %30 {offsets = [0, 64], sizes = [256, 32], strides = [1, 1]} : vector<256x128xf32> to vector<256x32xf32>
    %34 = vector.extract_strided_slice %30 {offsets = [0, 96], sizes = [256, 32], strides = [1, 1]} : vector<256x128xf32> to vector<256x32xf32>
    %c0_18 = arith.constant 0 : index
    %c0_19 = arith.constant 0 : index
    %c0_20 = arith.constant 0 : index
    %35 = vector.load %arg4[%c0_18, %c0_19, %c0_20] : memref<1x256x32xf32, #tpu.memory_space<vmem>>, vector<1x256x32xf32>
    %36 = vector.shape_cast %35 : vector<1x256x32xf32> to vector<256x32xf32>
    %37 = arith.mulf %32, %36 : vector<256x32xf32>
    %38 = arith.mulf %31, %34 : vector<256x32xf32>
    %39 = arith.addf %37, %38 : vector<256x32xf32>
    %40 = math.tanh %39 : vector<256x32xf32>
    %41 = arith.mulf %33, %40 : vector<256x32xf32>
    %42 = tpu.concatenate %41, %39 in 1 : vector<256x32xf32>, vector<256x32xf32> -> vector<256x64xf32>
    %c0_21 = arith.constant 0 : index
    %c0_22 = arith.constant 0 : index
    %c0_23 = arith.constant 0 : index
    %43 = vector.load %arg5[%c0_21, %c0_22, %c0_23] : memref<1x256x64xf32, #tpu.memory_space<vmem>>, vector<1x256x64xf32>
    %44 = vector.shape_cast %43 : vector<1x256x64xf32> to vector<256x64xf32>
    %45 = vector.shape_cast %42 : vector<256x64xf32> to vector<1x256x64xf32>
    tpu.vector_store %arg5[%c0_21, %c0_22, %c0_23], %45 {strides = array<i32>} : memref<1x256x64xf32, #tpu.memory_space<vmem>>, vector<1x256x64xf32>,
    return
  }
  func.func @transform_0(%arg0: i32) -> (i32, i32, i32) {
    %c0_i32 = arith.constant 0 : i32
    %c0_i32_0 = arith.constant 0 : i32
    %c0_i32_1 = arith.constant 0 : i32
    return %arg0, %c0_i32, %c0_i32_0 : i32, i32, i32
  }
  func.func @transform_1(%arg0: i32) -> (i32, i32, i32) {
    %c0_i32 = arith.constant 0 : i32
    %c0_i32_0 = arith.constant 0 : i32
    %c0_i32_1 = arith.constant 0 : i32
    %c0_i32_2 = arith.constant 0 : i32
    return %c0_i32, %c0_i32_0, %c0_i32_1 : i32, i32, i32
  }
  func.func @transform_2(%arg0: i32) -> (i32, i32) {
    %c0_i32 = arith.constant 0 : i32
    %c0_i32_0 = arith.constant 0 : i32
    %c0_i32_1 = arith.constant 0 : i32
    return %c0_i32, %c0_i32_0 : i32, i32
  }
  func.func @transform_3(%arg0: i32) -> (i32, i32, i32) {
    %c0_i32 = arith.constant 0 : i32
    %c0_i32_0 = arith.constant 0 : i32
    %c0_i32_1 = arith.constant 0 : i32
    return %arg0, %c0_i32, %c0_i32_0 : i32, i32, i32
  }
  func.func @transform_4(%arg0: i32) -> (i32, i32, i32) {
    %c0_i32 = arith.constant 0 : i32
    %c0_i32_0 = arith.constant 0 : i32
    %c0_i32_1 = arith.constant 0 : i32
    return %arg0, %c0_i32, %c0_i32_0 : i32, i32, i32
  }
}

</mosaic_0001>

<llo_original>
// kernel: tpu_custom_call.1
$region0: #{tpu_custom_call.1}
  #allocation0 [shape = 'u32[]', space=smem, size = 0x4, offset = 0x4, fixed_abs, tag = 'smem constant byte address 0x4 - core index']
  #allocation1 [shape = 'u32[72,128]{1,0:T(1,128)}', space=vmem, size = 0x9000, scoped, tag = 'internal scratch']
  %s0 = inlined_call_operand.vmem [shape: bf16[2,288,128], index: 0, kind: input, shape index: {}]
  %s1 = inlined_call_operand.vmem [shape: bf16[3,128,128], index: 1, kind: input, shape index: {}]
  %s2 = inlined_call_operand.vmem [shape: f32[1,128], index: 2, kind: input, shape index: {}]
  %s3 = inlined_call_operand.vmem [shape: f32[2,256,32], index: 3, kind: input, shape index: {}]
  %s4 = inlined_call_operand.vmem [shape: f32[2,256,64], index: 4, kind: output, shape index: {}]
  %s5 = sld [smem:[#allocation0]]
  $region49: #{tpu_custom_call.1} parent=0
    _
  %s7 = ssub.s32 1, %s5
  %s8 = scalar_select 0, %s7, %s5
  loop: start=0, step=1, limit=4
  $region2: #{tpu_custom_call.1} parent=0 // loop_pre_header
    _
  $region3: #{tpu_custom_call.1} parent=0 // loop_header
    %s10 = sphi 0, %s14
    %p11 = scmp.ge.s32.totalorder %s10, 4
    %s20 = sphi 0, %s22
    %s23 = sphi 0, %s20
    %s24 = sphi 0, %s23
    %s40 = sphi 0, %s24
    %s44 = sphi 0, %s44
    %s46 = sphi 0, %s44
    %s47 = sphi 0, %s46
    %s61 = sphi 0, %s47
    %s65 = sphi 0, %s65
    %s67 = sphi 0, %s65
    %s68 = sphi 0, %s67
    %s82 = sphi 0, %s68
    %s88 = sphi 0, %s90
    %s91 = sphi 0, %s88
    %s92 = sphi 0, %s91
    %s108 = sphi 0, %s92
    %s114 = sphi 0, %s116
    %s117 = sphi 0, %s114
    %s118 = sphi 0, %s117
    %s134 = sphi 0, %s118
  $region4: #{tpu_custom_call.1} parent=0 // loop_header_branch
    %13 = sbr.rel (%p11) target = $region8
  $region5: #{tpu_custom_call.1} parent=0 // loop_body
    %s15 = ssub.s32 %s10, 1
    %s16 = ssub.s32 %s10, 2
    %s17 = sadd.s32 %s10, 1
    %s18 = ssub.s32 %s10, %s17
    %p19 = scmp.eq.s32.totalorder %s18, 0
    %s21 = sadd.s32 %s20, 1
    %s22 = scalar_select %p19, %s20, %s21
    %p25 = pneg %p19
    %p26 = scmp.eq.s32.totalorder %s10, 1
    %p27 = por %p25, %p26
    %p28 = scmp.ne.s32.totalorder %s20, %s23
    %p29 = scmp.eq.s32.totalorder %s10, 0
    %p30 = por %p28, %p29
    %p31 = scmp.ne.s32.totalorder %s20, %s23
    %p32 = scmp.eq.s32.totalorder %s15, 1
    %p33 = por %p31, %p32
    %p34 = scmp.ne.s32.totalorder %s23, %s24
    %p35 = scmp.eq.s32.totalorder %s15, 0
    %p36 = por %p34, %p35
    %p37 = scmp.ne.s32.totalorder %s23, %s24
    %p38 = scmp.eq.s32.totalorder %s16, 1
    %p39 = por %p37, %p38
    %p41 = scmp.ne.s32.totalorder %s24, %s40
    %p42 = scmp.eq.s32.totalorder %s16, 0
    %p43 = por %p41, %p42
    %s45 = sadd.s32 %s44, 1
    %p48 = scmp.eq.s32.totalorder %s10, 1
    %p49 = scmp.ne.s32.totalorder %s44, %s46
    %p50 = scmp.eq.s32.totalorder %s10, 0
    %p51 = por %p49, %p50
    %p52 = scmp.ne.s32.totalorder %s44, %s46
    %p53 = scmp.eq.s32.totalorder %s15, 1
    %p54 = por %p52, %p53
    %p55 = scmp.ne.s32.totalorder %s46, %s47
    %p56 = scmp.eq.s32.totalorder %s15, 0
    %p57 = por %p55, %p56
    %p58 = scmp.ne.s32.totalorder %s46, %s47
    %p59 = scmp.eq.s32.totalorder %s16, 1
    %p60 = por %p58, %p59
    %p62 = scmp.ne.s32.totalorder %s47, %s61
    %p63 = scmp.eq.s32.totalorder %s16, 0
    %p64 = por %p62, %p63
    %s66 = sadd.s32 %s65, 1
    %p69 = scmp.eq.s32.totalorder %s10, 1
    %p70 = scmp.ne.s32.totalorder %s65, %s67
    %p71 = scmp.eq.s32.totalorder %s10, 0
    %p72 = por %p70, %p71
    %p73 = scmp.ne.s32.totalorder %s65, %s67
    %p74 = scmp.eq.s32.totalorder %s15, 1
    %p75 = por %p73, %p74
    %p76 = scmp.ne.s32.totalorder %s67, %s68
    %p77 = scmp.eq.s32.totalorder %s15, 0
    %p78 = por %p76, %p77
    %p79 = scmp.ne.s32.totalorder %s67, %s68
    %p80 = scmp.eq.s32.totalorder %s16, 1
    %p81 = por %p79, %p80
    %p83 = scmp.ne.s32.totalorder %s68, %s82
    %p84 = scmp.eq.s32.totalorder %s16, 0
    %p85 = por %p83, %p84
    %s86 = ssub.s32 %s10, %s17
    %p87 = scmp.eq.s32.totalorder %s86, 0
    %s89 = sadd.s32 %s88, 1
    %s90 = scalar_select %p87, %s88, %s89
    %p93 = pneg %p87
    %p94 = scmp.eq.s32.totalorder %s10, 1
    %p95 = por %p93, %p94
    %p96 = scmp.ne.s32.totalorder %s88, %s91
    %p97 = scmp.eq.s32.totalorder %s10, 0
    %p98 = por %p96, %p97
    %p99 = scmp.ne.s32.totalorder %s88, %s91
    %p100 = scmp.eq.s32.totalorder %s15, 1
    %p101 = por %p99, %p100
    %p102 = scmp.ne.s32.totalorder %s91, %s92
    %p103 = scmp.eq.s32.totalorder %s15, 0
    %p104 = por %p102, %p103
    %p105 = scmp.ne.s32.totalorder %s91, %s92
    %p106 = scmp.eq.s32.totalorder %s16, 1
    %p107 = por %p105, %p106
    %p109 = scmp.ne.s32.totalorder %s92, %s108
    %p110 = scmp.eq.s32.totalorder %s16, 0
    %p111 = por %p109, %p110
    %s112 = ssub.s32 %s10, %s17
    %p113 = scmp.eq.s32.totalorder %s112, 0
    %s115 = sadd.s32 %s114, 1
    %s116 = scalar_select %p113, %s114, %s115
    %p119 = pneg %p113
    %p120 = scmp.eq.s32.totalorder %s10, 1
    %p121 = por %p119, %p120
    %p122 = scmp.ne.s32.totalorder %s114, %s117
    %p123 = scmp.eq.s32.totalorder %s10, 0
    %p124 = por %p122, %p123
    %p125 = scmp.ne.s32.totalorder %s114, %s117
    %p126 = scmp.eq.s32.totalorder %s15, 1
    %p127 = por %p125, %p126
    %p128 = scmp.ne.s32.totalorder %s117, %s118
    %p129 = scmp.eq.s32.totalorder %s15, 0
    %p130 = por %p128, %p129
    %p131 = scmp.ne.s32.totalorder %s117, %s118
    %p132 = scmp.eq.s32.totalorder %s16, 1
    %p133 = por %p131, %p132
    %p135 = scmp.ne.s32.totalorder %s118, %s134
    %p136 = scmp.eq.s32.totalorder %s16, 0
    %p137 = por %p135, %p136
    %p138 = scmp.le.s32.totalorder 1, %s10
    %p139 = scmp.lt.s32.totalorder %s10, 3
    %p140 = pnand %p138, %p139
    %p141 = pneg %p140
    // Predicated region
    $region9: #{tpu_custom_call.1} parent=5 // pred_check
      _
    $region10: #{tpu_custom_call.1} parent=5 // pred_check_branch
      %143 = sbr.rel (%p140) target = $region12
    $region11: #{tpu_custom_call.1} parent=5 // pred_region
      %s144 = ssub.s32 %s10, 1
      // Predicated region
      $region13: #{tpu_custom_call.1} parent=11 // pred_check
        %p145 = pneg %p57
      $region14: #{tpu_custom_call.1} parent=11 // pred_check_branch
        %147 = sbr.rel (%p145) target = $region16
      $region15: #{tpu_custom_call.1} parent=11 // pred_region
        _
      $region16: #{tpu_custom_call.1} parent=11 // pred_fallthru
        _
      // Predicated region
      $region17: #{tpu_custom_call.1} parent=11 // pred_check
        %p148 = pneg %p78
      $region18: #{tpu_custom_call.1} parent=11 // pred_check_branch
        %150 = sbr.rel (%p148) target = $region20
      $region19: #{tpu_custom_call.1} parent=11 // pred_region
        _
      $region20: #{tpu_custom_call.1} parent=11 // pred_fallthru
        _
    $region12: #{tpu_custom_call.1} parent=5 // pred_fallthru
      _
    %p151 = scmp.lt.s32.totalorder %s10, 2
    // Predicated region
    $region21: #{tpu_custom_call.1} parent=5 // pred_check
      %p152 = pneg %p151
    $region22: #{tpu_custom_call.1} parent=5 // pred_check_branch
      %154 = sbr.rel (%p152) target = $region24
    $region23: #{tpu_custom_call.1} parent=5 // pred_region
      // Predicated region
      $region25: #{tpu_custom_call.1} parent=23 // pred_check
        %p155 = pneg %p30
      $region26: #{tpu_custom_call.1} parent=23 // pred_check_branch
        %157 = sbr.rel (%p155) target = $region28
      $region27: #{tpu_custom_call.1} parent=23 // pred_region
        %p158 = scmp.lt.s32.totalorder %s10, 1
        %s159 = scalar_select %p158, %s10, 1
        %s160 = smul.addr %s159, 36
        %s161 = smul.addr %s160, 4
        %s162 = scalar_lea.vmem %s0, %s161
      $region28: #{tpu_custom_call.1} parent=23 // pred_fallthru
        _
      // Predicated region
      $region29: #{tpu_custom_call.1} parent=23 // pred_check
        %p163 = pneg %p98
      $region30: #{tpu_custom_call.1} parent=23 // pred_check_branch
        %165 = sbr.rel (%p163) target = $region32
      $region31: #{tpu_custom_call.1} parent=23 // pred_region
        %p166 = scmp.lt.s32.totalorder %s10, 1
        %s167 = scalar_select %p166, %s10, 1
        %s168 = smul.addr %s167, 32
        %s169 = smul.addr %s168, 8
        %s170 = scalar_lea.vmem %s3, %s169
      $region32: #{tpu_custom_call.1} parent=23 // pred_fallthru
        _
    $region24: #{tpu_custom_call.1} parent=5 // pred_fallthru
      _
    %p171 = scmp.le.s32.totalorder 1, %s10
    %p172 = scmp.lt.s32.totalorder %s10, 3
    %p173 = pnand %p171, %p172
    %p174 = pneg %p173
    // Predicated region
    $region33: #{tpu_custom_call.1} parent=5 // pred_check
      _
    $region34: #{tpu_custom_call.1} parent=5 // pred_check_branch
      %176 = sbr.rel (%p173) target = $region36
    $region35: #{tpu_custom_call.1} parent=5 // pred_region
      %s177 = ssub.s32 %s10, 1
      %p178 = scmp.lt.s32.totalorder %s15, 1
      %s179 = scalar_select %p178, %s15, 1
      %s180 = smul.addr %s179, 36
      %s181 = smul.addr %s180, 4
      %s182 = scalar_lea.vmem %s0, %s181
      %p183 = pneg %p36
      %p184 = pneg %p33
      %p185 = pneg %p57
      %p186 = pneg %p54
      %p187 = pneg %p78
      %p188 = pneg %p75
      %p189 = scmp.lt.s32.totalorder %s15, 1
      %s190 = scalar_select %p189, %s15, 1
      %s191 = smul.addr %s190, 32
      %s192 = smul.addr %s191, 8
      %s193 = scalar_lea.vmem %s3, %s192
      %p194 = pneg %p104
      %p195 = pneg %p101
      %p196 = pneg %p130
      %p197 = pneg %p127
      %p198 = scmp.lt.s32.totalorder %s15, 1
      %s199 = scalar_select %p198, %s15, 1
      %s200 = smul.addr %s199, 32
      %s201 = smul.addr %s200, 8
      %s202 = scalar_lea.vmem %s4, %s201
      %p203 = scmp.lt.s32.totalorder %s15, 1
      %s204 = scalar_select %p203, %s15, 1
      %s205 = smul.addr %s204, 36
      %s206 = smul.addr %s205, 4
      %s207 = scalar_lea.vmem %s0, %s206
      %p208 = scmp.lt.s32.totalorder %s15, 1
      %s209 = scalar_select %p208, %s15, 1
      %s210 = smul.addr %s209, 32
      %s211 = smul.addr %s210, 8
      %s212 = scalar_lea.vmem %s3, %s211
      %p213 = scmp.lt.s32.totalorder %s15, 1
      %s214 = scalar_select %p213, %s15, 1
      %s215 = smul.addr %s214, 32
      %s216 = smul.addr %s215, 8
      %s217 = scalar_lea.vmem %s4, %s216
      %v218 = vld [vmem:[%s2] sm:$0x1]
      %v220 = vperm.slane %v218, 0
      %v222 = vld [vmem:[%s207] sm:$0xf]
      %v223 = vld [vmem:[%s207 + $0x4] sm:$0xf]
      %v224 = vld [vmem:[%s207 + $0x8] sm:$0xf]
      %v225 = vld [vmem:[%s207 + $0xc] sm:$0xf]
      %v226 = vld [vmem:[%s207 + $0x10] sm:$0xf]
      %v227 = vld [vmem:[%s207 + $0x14] sm:$0xf]
      %v228 = vld [vmem:[%s207 + $0x18] sm:$0xf]
      %v229 = vld [vmem:[%s207 + $0x1c] sm:$0xf]
      %v230 = vld [vmem:[%s207 + $0x20] sm:$0xf]
      %v231 = vld [vmem:[%s207 + $0x24] sm:$0xf]
      %v232 = vld [vmem:[%s207 + $0x28] sm:$0xf]
      %v233 = vld [vmem:[%s207 + $0x2c] sm:$0xf]
      %v234 = vld [vmem:[%s207 + $0x30] sm:$0xf]
      %v235 = vld [vmem:[%s207 + $0x34] sm:$0xf]
      %v236 = vld [vmem:[%s207 + $0x38] sm:$0xf]
      %v237 = vld [vmem:[%s207 + $0x3c] sm:$0xf]
      %v238 = vld [vmem:[%s207 + $0x40] sm:$0xf]
      %v239 = vld [vmem:[%s207 + $0x44] sm:$0xf]
      %v240 = vld [vmem:[%s207 + $0x48] sm:$0xf]
      %v241 = vld [vmem:[%s207 + $0x4c] sm:$0xf]
      %v242 = vld [vmem:[%s207 + $0x50] sm:$0xf]
      %v243 = vld [vmem:[%s207 + $0x54] sm:$0xf]
      %v244 = vld [vmem:[%s207 + $0x58] sm:$0xf]
      %v245 = vld [vmem:[%s207 + $0x5c] sm:$0xf]
      %v246 = vld [vmem:[%s207 + $0x60] sm:$0xf]
      %v247 = vld [vmem:[%s207 + $0x64] sm:$0xf]
      %v248 = vld [vmem:[%s207 + $0x68] sm:$0xf]
      %v249 = vld [vmem:[%s207 + $0x6c] sm:$0xf]
      %v250 = vld [vmem:[%s207 + $0x70] sm:$0xf]
      %v251 = vld [vmem:[%s207 + $0x74] sm:$0xf]
      %v252 = vld [vmem:[%s207 + $0x78] sm:$0xf]
      %v253 = vld [vmem:[%s207 + $0x7c] sm:$0xf]
      %v254 = vld [vmem:[%s1] sm:$0xf]
      %v255 = vld [vmem:[%s1 + $0x4] sm:$0xf]
      %v256 = vld [vmem:[%s1 + $0x8] sm:$0xf]
      %v257 = vld [vmem:[%s1 + $0xc] sm:$0xf]
      %v258 = vld [vmem:[%s1 + $0x10] sm:$0xf]
      %v259 = vld [vmem:[%s1 + $0x14] sm:$0xf]
      %v260 = vld [vmem:[%s1 + $0x18] sm:$0xf]
      %v261 = vld [vmem:[%s1 + $0x1c] sm:$0xf]
      %v262 = vld [vmem:[%s1 + $0x20] sm:$0xf]
      %v263 = vld [vmem:[%s1 + $0x24] sm:$0xf]
      %v264 = vld [vmem:[%s1 + $0x28] sm:$0xf]
      %v265 = vld [vmem:[%s1 + $0x2c] sm:$0xf]
      %v266 = vld [vmem:[%s1 + $0x30] sm:$0xf]
      %v267 = vld [vmem:[%s1 + $0x34] sm:$0xf]
      %v268 = vld [vmem:[%s1 + $0x38] sm:$0xf]
      %v269 = vld [vmem:[%s1 + $0x3c] sm:$0xf]
      %v302 = vunpack.c.l.b16 %v222
      %v303 = vunpack.c.l.b16 %v223
      %v304 = vunpack.c.l.b16 %v224
      %v305 = vunpack.c.l.b16 %v225
      %v306 = vunpack.c.l.b16 %v226
      %v307 = vunpack.c.l.b16 %v227
      %v308 = vunpack.c.l.b16 %v228
      %v309 = vunpack.c.l.b16 %v229
      %v310 = vunpack.c.l.b16 %v230
      %v311 = vunpack.c.l.b16 %v231
      %v312 = vunpack.c.l.b16 %v232
      %v313 = vunpack.c.l.b16 %v233
      %v314 = vunpack.c.l.b16 %v234
      %v315 = vunpack.c.l.b16 %v235
      %v316 = vunpack.c.l.b16 %v236
      %v317 = vunpack.c.l.b16 %v237
      %v318 = vunpack.c.l.b16 %v238
      %v319 = vunpack.c.l.b16 %v239
      %v320 = vunpack.c.l.b16 %v240
      %v321 = vunpack.c.l.b16 %v241
      %v322 = vunpack.c.l.b16 %v242
      %v323 = vunpack.c.l.b16 %v243
      %v324 = vunpack.c.l.b16 %v244
      %v325 = vunpack.c.l.b16 %v245
      %v326 = vunpack.c.l.b16 %v246
      %v327 = vunpack.c.l.b16 %v247
      %v328 = vunpack.c.l.b16 %v248
      %v329 = vunpack.c.l.b16 %v249
      %v330 = vunpack.c.l.b16 %v250
      %v331 = vunpack.c.l.b16 %v251
      %v332 = vunpack.c.l.b16 %v252
      %v333 = vunpack.c.l.b16 %v253
      %v334 = vpack.c.b16 %v303, %v302
      %v335 = vpack.c.b16 %v305, %v304
      %v336 = vpack.c.b16 %v307, %v306
      %v337 = vpack.c.b16 %v309, %v308
      %v338 = vpack.c.b16 %v311, %v310
      %v339 = vpack.c.b16 %v313, %v312
      %v340 = vpack.c.b16 %v315, %v314
      %v341 = vpack.c.b16 %v317, %v316
      %v342 = vpack.c.b16 %v319, %v318
      %v343 = vpack.c.b16 %v321, %v320
      %v344 = vpack.c.b16 %v323, %v322
      %v345 = vpack.c.b16 %v325, %v324
      %v346 = vpack.c.b16 %v327, %v326
      %v347 = vpack.c.b16 %v329, %v328
      %v348 = vpack.c.b16 %v331, %v330
      %v349 = vpack.c.b16 %v333, %v332
      %v382 = vunpack.c.l.b16 %v254
      %v383 = vunpack.c.l.b16 %v255
      %v384 = vunpack.c.l.b16 %v256
      %v385 = vunpack.c.l.b16 %v257
      %v386 = vunpack.c.l.b16 %v258
      %v387 = vunpack.c.l.b16 %v259
      %v388 = vunpack.c.l.b16 %v260
      %v389 = vunpack.c.l.b16 %v261
      %v390 = vunpack.c.l.b16 %v262
      %v391 = vunpack.c.l.b16 %v263
      %v392 = vunpack.c.l.b16 %v264
      %v393 = vunpack.c.l.b16 %v265
      %v394 = vunpack.c.l.b16 %v266
      %v395 = vunpack.c.l.b16 %v267
      %v396 = vunpack.c.l.b16 %v268
      %v397 = vunpack.c.l.b16 %v269
      %v398 = vpack.c.b16 %v383, %v382
      %v399 = vpack.c.b16 %v385, %v384
      %v400 = vpack.c.b16 %v387, %v386
      %v401 = vpack.c.b16 %v389, %v388
      %v402 = vpack.c.b16 %v391, %v390
      %v403 = vpack.c.b16 %v393, %v392
      %v404 = vpack.c.b16 %v395, %v394
      %v405 = vpack.c.b16 %v397, %v396
      %414 = vmatpush.bf16.msra.mxu0 %v405
      %415 = vmatpush.bf16.msra.mxu0 %v404
      %416 = vmatpush.bf16.msra.mxu0 %v403
      %417 = vmatpush.bf16.msra.mxu0 %v402
      %418 = vmatpush.bf16.msra.mxu0 %v401
      %419 = vmatpush.bf16.msra.mxu0 %v400
      %420 = vmatpush.bf16.msra.mxu0 %v399
      %421 = vmatpush.bf16.msra.mxu0 %v398
      %422 = vmatmul.bf16.gmra.mxu0 %v334
      %v423 = vpop.f32.mrf.mxu0
      %v424 = vadd.f32 0.0, %v423
      %v425 = vpop.f32.mrf.mxu0
      %v426 = vadd.f32 0.0, %v425
      %427 = vmatmul.bf16.gmra.mxu0 %v335
      %v428 = vpop.f32.mrf.mxu0
      %v429 = vadd.f32 0.0, %v428
      %v430 = vpop.f32.mrf.mxu0
      %v431 = vadd.f32 0.0, %v430
      %432 = vmatmul.bf16.gmra.mxu0 %v336
      %v433 = vpop.f32.mrf.mxu0
      %v434 = vadd.f32 0.0, %v433
      %v435 = vpop.f32.mrf.mxu0
      %v436 = vadd.f32 0.0, %v435
      %437 = vmatmul.bf16.gmra.mxu0 %v337
      %v438 = vpop.f32.mrf.mxu0
      %v439 = vadd.f32 0.0, %v438
      %v440 = vpop.f32.mrf.mxu0
      %v441 = vadd.f32 0.0, %v440
      %442 = vmatmul.bf16.gmra.mxu0 %v338
      %v443 = vpop.f32.mrf.mxu0
      %v444 = vadd.f32 0.0, %v443
      %v445 = vpop.f32.mrf.mxu0
      %v446 = vadd.f32 0.0, %v445
      %447 = vmatmul.bf16.gmra.mxu0 %v339
      %v448 = vpop.f32.mrf.mxu0
      %v449 = vadd.f32 0.0, %v448
      %v450 = vpop.f32.mrf.mxu0
      %v451 = vadd.f32 0.0, %v450
      %452 = vmatmul.bf16.gmra.mxu0 %v340
      %v453 = vpop.f32.mrf.mxu0
      %v454 = vadd.f32 0.0, %v453
      %v455 = vpop.f32.mrf.mxu0
      %v456 = vadd.f32 0.0, %v455
      %457 = vmatmul.bf16.gmra.mxu0 %v341
      %v458 = vpop.f32.mrf.mxu0
      %v459 = vadd.f32 0.0, %v458
      %v460 = vpop.f32.mrf.mxu0
      %v461 = vadd.f32 0.0, %v460
      %462 = vmatmul.bf16.gmra.mxu0 %v342
      %v463 = vpop.f32.mrf.mxu0
      %v464 = vadd.f32 0.0, %v463
      %v465 = vpop.f32.mrf.mxu0
      %v466 = vadd.f32 0.0, %v465
      %467 = vmatmul.bf16.gmra.mxu0 %v343
      %v468 = vpop.f32.mrf.mxu0
      %v469 = vadd.f32 0.0, %v468
      %v470 = vpop.f32.mrf.mxu0
      %v471 = vadd.f32 0.0, %v470
      %472 = vmatmul.bf16.gmra.mxu0 %v344
      %v473 = vpop.f32.mrf.mxu0
      %v474 = vadd.f32 0.0, %v473
      %v475 = vpop.f32.mrf.mxu0
      %v476 = vadd.f32 0.0, %v475
      %477 = vmatmul.bf16.gmra.mxu0 %v345
      %v478 = vpop.f32.mrf.mxu0
      %v479 = vadd.f32 0.0, %v478
      %v480 = vpop.f32.mrf.mxu0
      %v481 = vadd.f32 0.0, %v480
      %482 = vmatmul.bf16.gmra.mxu0 %v346
      %v483 = vpop.f32.mrf.mxu0
      %v484 = vadd.f32 0.0, %v483
      %v485 = vpop.f32.mrf.mxu0
      %v486 = vadd.f32 0.0, %v485
      %487 = vmatmul.bf16.gmra.mxu0 %v347
      %v488 = vpop.f32.mrf.mxu0
      %v489 = vadd.f32 0.0, %v488
      %v490 = vpop.f32.mrf.mxu0
      %v491 = vadd.f32 0.0, %v490
      %492 = vmatmul.bf16.gmra.mxu0 %v348
      %v493 = vpop.f32.mrf.mxu0
      %v494 = vadd.f32 0.0, %v493
      %v495 = vpop.f32.mrf.mxu0
      %v496 = vadd.f32 0.0, %v495
      %497 = vmatmul.bf16.gmra.mxu0 %v349
      %v498 = vpop.f32.mrf.mxu0
      %v499 = vadd.f32 0.0, %v498
      %v500 = vpop.f32.mrf.mxu0
      %v501 = vadd.f32 0.0, %v500
      %502 = vdwg.mxu0
      %v503 = vadd.f32 %v220, %v424
      %v504 = vadd.f32 %v220, %v426
      %v505 = vadd.f32 %v220, %v429
      %v506 = vadd.f32 %v220, %v431
      %v507 = vadd.f32 %v220, %v434
      %v508 = vadd.f32 %v220, %v436
      %v509 = vadd.f32 %v220, %v439
      %v510 = vadd.f32 %v220, %v441
      %v511 = vadd.f32 %v220, %v444
      %v512 = vadd.f32 %v220, %v446
      %v513 = vadd.f32 %v220, %v449
      %v514 = vadd.f32 %v220, %v451
      %v515 = vadd.f32 %v220, %v454
      %v516 = vadd.f32 %v220, %v456
      %v517 = vadd.f32 %v220, %v459
      %v518 = vadd.f32 %v220, %v461
      %v519 = vadd.f32 %v220, %v464
      %v520 = vadd.f32 %v220, %v466
      %v521 = vadd.f32 %v220, %v469
      %v522 = vadd.f32 %v220, %v471
      %v523 = vadd.f32 %v220, %v474
      %v524 = vadd.f32 %v220, %v476
      %v525 = vadd.f32 %v220, %v479
      %v526 = vadd.f32 %v220, %v481
      %v527 = vadd.f32 %v220, %v484
      %v528 = vadd.f32 %v220, %v486
      %v529 = vadd.f32 %v220, %v489
      %v530 = vadd.f32 %v220, %v491
      %v531 = vadd.f32 %v220, %v494
      %v532 = vadd.f32 %v220, %v496
      %v533 = vadd.f32 %v220, %v499
      %v534 = vadd.f32 %v220, %v501
      %v535 = vld [vmem:[%s207 + $0x8] sm:$0xf]
      %v536 = vld [vmem:[%s207 + $0xc] sm:$0xf]
      %v537 = vld [vmem:[%s207 + $0x10] sm:$0xf]
      %v538 = vld [vmem:[%s207 + $0x14] sm:$0xf]
      %v539 = vld [vmem:[%s207 + $0x18] sm:$0xf]
      %v540 = vld [vmem:[%s207 + $0x1c] sm:$0xf]
      %v541 = vld [vmem:[%s207 + $0x20] sm:$0xf]
      %v542 = vld [vmem:[%s207 + $0x24] sm:$0xf]
      %v543 = vld [vmem:[%s207 + $0x28] sm:$0xf]
      %v544 = vld [vmem:[%s207 + $0x2c] sm:$0xf]
      %v545 = vld [vmem:[%s207 + $0x30] sm:$0xf]
      %v546 = vld [vmem:[%s207 + $0x34] sm:$0xf]
      %v547 = vld [vmem:[%s207 + $0x38] sm:$0xf]
      %v548 = vld [vmem:[%s207 + $0x3c] sm:$0xf]
      %v549 = vld [vmem:[%s207 + $0x40] sm:$0xf]
      %v550 = vld [vmem:[%s207 + $0x44] sm:$0xf]
      %v551 = vld [vmem:[%s207 + $0x48] sm:$0xf]
      %v552 = vld [vmem:[%s207 + $0x4c] sm:$0xf]
      %v553 = vld [vmem:[%s207 + $0x50] sm:$0xf]
      %v554 = vld [vmem:[%s207 + $0x54] sm:$0xf]
      %v555 = vld [vmem:[%s207 + $0x58] sm:$0xf]
      %v556 = vld [vmem:[%s207 + $0x5c] sm:$0xf]
      %v557 = vld [vmem:[%s207 + $0x60] sm:$0xf]
      %v558 = vld [vmem:[%s207 + $0x64] sm:$0xf]
      %v559 = vld [vmem:[%s207 + $0x68] sm:$0xf]
      %v560 = vld [vmem:[%s207 + $0x6c] sm:$0xf]
      %v561 = vld [vmem:[%s207 + $0x70] sm:$0xf]
      %v562 = vld [vmem:[%s207 + $0x74] sm:$0xf]
      %v563 = vld [vmem:[%s207 + $0x78] sm:$0xf]
      %v564 = vld [vmem:[%s207 + $0x7c] sm:$0xf]
      %v565 = vld [vmem:[%s207 + $0x80] sm:$0xf]
      %v566 = vld [vmem:[%s207 + $0x84] sm:$0xf]
      %s567 = scalar_lea.vmem %s1, 64
      %v568 = vld [vmem:[%s567] sm:$0xf]
      %v569 = vld [vmem:[%s567 + $0x4] sm:$0xf]
      %v570 = vld [vmem:[%s567 + $0x8] sm:$0xf]
      %v571 = vld [vmem:[%s567 + $0xc] sm:$0xf]
      %v572 = vld [vmem:[%s567 + $0x10] sm:$0xf]
      %v573 = vld [vmem:[%s567 + $0x14] sm:$0xf]
      %v574 = vld [vmem:[%s567 + $0x18] sm:$0xf]
      %v575 = vld [vmem:[%s567 + $0x1c] sm:$0xf]
      %v576 = vld [vmem:[%s567 + $0x20] sm:$0xf]
      %v577 = vld [vmem:[%s567 + $0x24] sm:$0xf]
      %v578 = vld [vmem:[%s567 + $0x28] sm:$0xf]
      %v579 = vld [vmem:[%s567 + $0x2c] sm:$0xf]
      %v580 = vld [vmem:[%s567 + $0x30] sm:$0xf]
      %v581 = vld [vmem:[%s567 + $0x34] sm:$0xf]
      %v582 = vld [vmem:[%s567 + $0x38] sm:$0xf]
      %v583 = vld [vmem:[%s567 + $0x3c] sm:$0xf]
      %v616 = vunpack.c.l.b16 %v535
      %v617 = vunpack.c.l.b16 %v536
      %v618 = vunpack.c.l.b16 %v537
      %v619 = vunpack.c.l.b16 %v538
      %v620 = vunpack.c.l.b16 %v539
      %v621 = vunpack.c.l.b16 %v540
      %v622 = vunpack.c.l.b16 %v541
      %v623 = vunpack.c.l.b16 %v542
      %v624 = vunpack.c.l.b16 %v543
      %v625 = vunpack.c.l.b16 %v544
      %v626 = vunpack.c.l.b16 %v545
      %v627 = vunpack.c.l.b16 %v546
      %v628 = vunpack.c.l.b16 %v547
      %v629 = vunpack.c.l.b16 %v548
      %v630 = vunpack.c.l.b16 %v549
      %v631 = vunpack.c.l.b16 %v550
      %v632 = vunpack.c.l.b16 %v551
      %v633 = vunpack.c.l.b16 %v552
      %v634 = vunpack.c.l.b16 %v553
      %v635 = vunpack.c.l.b16 %v554
      %v636 = vunpack.c.l.b16 %v555
      %v637 = vunpack.c.l.b16 %v556
      %v638 = vunpack.c.l.b16 %v557
      %v639 = vunpack.c.l.b16 %v558
      %v640 = vunpack.c.l.b16 %v559
      %v641 = vunpack.c.l.b16 %v560
      %v642 = vunpack.c.l.b16 %v561
      %v643 = vunpack.c.l.b16 %v562
      %v644 = vunpack.c.l.b16 %v563
      %v645 = vunpack.c.l.b16 %v564
      %v646 = vunpack.c.l.b16 %v565
      %v647 = vunpack.c.l.b16 %v566
      %v648 = vpack.c.b16 %v617, %v616
      %v649 = vpack.c.b16 %v619, %v618
      %v650 = vpack.c.b16 %v621, %v620
      %v651 = vpack.c.b16 %v623, %v622
      %v652 = vpack.c.b16 %v625, %v624
      %v653 = vpack.c.b16 %v627, %v626
      %v654 = vpack.c.b16 %v629, %v628
      %v655 = vpack.c.b16 %v631, %v630
      %v656 = vpack.c.b16 %v633, %v632
      %v657 = vpack.c.b16 %v635, %v634
      %v658 = vpack.c.b16 %v637, %v636
      %v659 = vpack.c.b16 %v639, %v638
      %v660 = vpack.c.b16 %v641, %v640
      %v661 = vpack.c.b16 %v643, %v642
      %v662 = vpack.c.b16 %v645, %v644
      %v663 = vpack.c.b16 %v647, %v646
      %v696 = vunpack.c.l.b16 %v568
      %v697 = vunpack.c.l.b16 %v569
      %v698 = vunpack.c.l.b16 %v570
      %v699 = vunpack.c.l.b16 %v571
      %v700 = vunpack.c.l.b16 %v572
      %v701 = vunpack.c.l.b16 %v573
      %v702 = vunpack.c.l.b16 %v574
      %v703 = vunpack.c.l.b16 %v575
      %v704 = vunpack.c.l.b16 %v576
      %v705 = vunpack.c.l.b16 %v577
      %v706 = vunpack.c.l.b16 %v578
      %v707 = vunpack.c.l.b16 %v579
      %v708 = vunpack.c.l.b16 %v580
      %v709 = vunpack.c.l.b16 %v581
      %v710 = vunpack.c.l.b16 %v582
      %v711 = vunpack.c.l.b16 %v583
      %v712 = vpack.c.b16 %v697, %v696
      %v713 = vpack.c.b16 %v699, %v698
      %v714 = vpack.c.b16 %v701, %v700
      %v715 = vpack.c.b16 %v703, %v702
      %v716 = vpack.c.b16 %v705, %v704
      %v717 = vpack.c.b16 %v707, %v706
      %v718 = vpack.c.b16 %v709, %v708
      %v719 = vpack.c.b16 %v711, %v710
      %728 = vmatpush.bf16.msra.mxu0 %v719
      %729 = vmatpush.bf16.msra.mxu0 %v718
      %730 = vmatpush.bf16.msra.mxu0 %v717
      %731 = vmatpush.bf16.msra.mxu0 %v716
      %732 = vmatpush.bf16.msra.mxu0 %v715
      %733 = vmatpush.bf16.msra.mxu0 %v714
      %734 = vmatpush.bf16.msra.mxu0 %v713
      %735 = vmatpush.bf16.msra.mxu0 %v712
      %736 = vmatmul.bf16.gmra.mxu0 %v648
      %v737 = vpop.f32.mrf.mxu0
      %v738 = vadd.f32 0.0, %v737
      %v739 = vpop.f32.mrf.mxu0
      %v740 = vadd.f32 0.0, %v739
      %741 = vmatmul.bf16.gmra.mxu0 %v649
      %v742 = vpop.f32.mrf.mxu0
      %v743 = vadd.f32 0.0, %v742
      %v744 = vpop.f32.mrf.mxu0
      %v745 = vadd.f32 0.0, %v744
      %746 = vmatmul.bf16.gmra.mxu0 %v650
      %v747 = vpop.f32.mrf.mxu0
      %v748 = vadd.f32 0.0, %v747
      %v749 = vpop.f32.mrf.mxu0
      %v750 = vadd.f32 0.0, %v749
      %751 = vmatmul.bf16.gmra.mxu0 %v651
      %v752 = vpop.f32.mrf.mxu0
      %v753 = vadd.f32 0.0, %v752
      %v754 = vpop.f32.mrf.mxu0
      %v755 = vadd.f32 0.0, %v754
      %756 = vmatmul.bf16.gmra.mxu0 %v652
      %v757 = vpop.f32.mrf.mxu0
      %v758 = vadd.f32 0.0, %v757
      %v759 = vpop.f32.mrf.mxu0
      %v760 = vadd.f32 0.0, %v759
      %761 = vmatmul.bf16.gmra.mxu0 %v653
      %v762 = vpop.f32.mrf.mxu0
      %v763 = vadd.f32 0.0, %v762
      %v764 = vpop.f32.mrf.mxu0
      %v765 = vadd.f32 0.0, %v764
      %766 = vmatmul.bf16.gmra.mxu0 %v654
      %v767 = vpop.f32.mrf.mxu0
      %v768 = vadd.f32 0.0, %v767
      %v769 = vpop.f32.mrf.mxu0
      %v770 = vadd.f32 0.0, %v769
      %771 = vmatmul.bf16.gmra.mxu0 %v655
      %v772 = vpop.f32.mrf.mxu0
      %v773 = vadd.f32 0.0, %v772
      %v774 = vpop.f32.mrf.mxu0
      %v775 = vadd.f32 0.0, %v774
      %776 = vmatmul.bf16.gmra.mxu0 %v656
      %v777 = vpop.f32.mrf.mxu0
      %v778 = vadd.f32 0.0, %v777
      %v779 = vpop.f32.mrf.mxu0
      %v780 = vadd.f32 0.0, %v779
      %781 = vmatmul.bf16.gmra.mxu0 %v657
      %v782 = vpop.f32.mrf.mxu0
      %v783 = vadd.f32 0.0, %v782
      %v784 = vpop.f32.mrf.mxu0
      %v785 = vadd.f32 0.0, %v784
      %786 = vmatmul.bf16.gmra.mxu0 %v658
      %v787 = vpop.f32.mrf.mxu0
      %v788 = vadd.f32 0.0, %v787
      %v789 = vpop.f32.mrf.mxu0
      %v790 = vadd.f32 0.0, %v789
      %791 = vmatmul.bf16.gmra.mxu0 %v659
      %v792 = vpop.f32.mrf.mxu0
      %v793 = vadd.f32 0.0, %v792
      %v794 = vpop.f32.mrf.mxu0
      %v795 = vadd.f32 0.0, %v794
      %796 = vmatmul.bf16.gmra.mxu0 %v660
      %v797 = vpop.f32.mrf.mxu0
      %v798 = vadd.f32 0.0, %v797
      %v799 = vpop.f32.mrf.mxu0
      %v800 = vadd.f32 0.0, %v799
      %801 = vmatmul.bf16.gmra.mxu0 %v661
      %v802 = vpop.f32.mrf.mxu0
      %v803 = vadd.f32 0.0, %v802
      %v804 = vpop.f32.mrf.mxu0
      %v805 = vadd.f32 0.0, %v804
      %806 = vmatmul.bf16.gmra.mxu0 %v662
      %v807 = vpop.f32.mrf.mxu0
      %v808 = vadd.f32 0.0, %v807
      %v809 = vpop.f32.mrf.mxu0
      %v810 = vadd.f32 0.0, %v809
      %811 = vmatmul.bf16.gmra.mxu0 %v663
      %v812 = vpop.f32.mrf.mxu0
      %v813 = vadd.f32 0.0, %v812
      %v814 = vpop.f32.mrf.mxu0
      %v815 = vadd.f32 0.0, %v814
      %816 = vdwg.mxu0
      %v817 = vadd.f32 %v503, %v738
      %v818 = vadd.f32 %v504, %v740
      %v819 = vadd.f32 %v505, %v743
      %v820 = vadd.f32 %v506, %v745
      %v821 = vadd.f32 %v507, %v748
      %v822 = vadd.f32 %v508, %v750
      %v823 = vadd.f32 %v509, %v753
      %v824 = vadd.f32 %v510, %v755
      %v825 = vadd.f32 %v511, %v758
      %v826 = vadd.f32 %v512, %v760
      %v827 = vadd.f32 %v513, %v763
      %v828 = vadd.f32 %v514, %v765
      %v829 = vadd.f32 %v515, %v768
      %v830 = vadd.f32 %v516, %v770
      %v831 = vadd.f32 %v517, %v773
      %v832 = vadd.f32 %v518, %v775
      %v833 = vadd.f32 %v519, %v778
      %v834 = vadd.f32 %v520, %v780
      %v835 = vadd.f32 %v521, %v783
      %v836 = vadd.f32 %v522, %v785
      %v837 = vadd.f32 %v523, %v788
      %v838 = vadd.f32 %v524, %v790
      %v839 = vadd.f32 %v525, %v793
      %v840 = vadd.f32 %v526, %v795
      %v841 = vadd.f32 %v527, %v798
      %v842 = vadd.f32 %v528, %v800
      %v843 = vadd.f32 %v529, %v803
      %v844 = vadd.f32 %v530, %v805
      %v845 = vadd.f32 %v531, %v808
      %v846 = vadd.f32 %v532, %v810
      %v847 = vadd.f32 %v533, %v813
      %v848 = vadd.f32 %v534, %v815
      %v849 = vld [vmem:[%s207 + $0x10] sm:$0xf]
      %v850 = vld [vmem:[%s207 + $0x14] sm:$0xf]
      %v851 = vld [vmem:[%s207 + $0x18] sm:$0xf]
      %v852 = vld [vmem:[%s207 + $0x1c] sm:$0xf]
      %v853 = vld [vmem:[%s207 + $0x20] sm:$0xf]
      %v854 = vld [vmem:[%s207 + $0x24] sm:$0xf]
      %v855 = vld [vmem:[%s207 + $0x28] sm:$0xf]
      %v856 = vld [vmem:[%s207 + $0x2c] sm:$0xf]
      %v857 = vld [vmem:[%s207 + $0x30] sm:$0xf]
      %v858 = vld [vmem:[%s207 + $0x34] sm:$0xf]
      %v859 = vld [vmem:[%s207 + $0x38] sm:$0xf]
      %v860 = vld [vmem:[%s207 + $0x3c] sm:$0xf]
      %v861 = vld [vmem:[%s207 + $0x40] sm:$0xf]
      %v862 = vld [vmem:[%s207 + $0x44] sm:$0xf]
      %v863 = vld [vmem:[%s207 + $0x48] sm:$0xf]
      %v864 = vld [vmem:[%s207 + $0x4c] sm:$0xf]
      %v865 = vld [vmem:[%s207 + $0x50] sm:$0xf]
      %v866 = vld [vmem:[%s207 + $0x54] sm:$0xf]
      %v867 = vld [vmem:[%s207 + $0x58] sm:$0xf]
      %v868 = vld [vmem:[%s207 + $0x5c] sm:$0xf]
      %v869 = vld [vmem:[%s207 + $0x60] sm:$0xf]
      %v870 = vld [vmem:[%s207 + $0x64] sm:$0xf]
      %v871 = vld [vmem:[%s207 + $0x68] sm:$0xf]
      %v872 = vld [vmem:[%s207 + $0x6c] sm:$0xf]
      %v873 = vld [vmem:[%s207 + $0x70] sm:$0xf]
      %v874 = vld [vmem:[%s207 + $0x74] sm:$0xf]
      %v875 = vld [vmem:[%s207 + $0x78] sm:$0xf]
      %v876 = vld [vmem:[%s207 + $0x7c] sm:$0xf]
      %v877 = vld [vmem:[%s207 + $0x80] sm:$0xf]
      %v878 = vld [vmem:[%s207 + $0x84] sm:$0xf]
      %v879 = vld [vmem:[%s207 + $0x88] sm:$0xf]
      %v880 = vld [vmem:[%s207 + $0x8c] sm:$0xf]
      %s881 = scalar_lea.vmem %s1, 128
      %v882 = vld [vmem:[%s881] sm:$0xf]
      %v883 = vld [vmem:[%s881 + $0x4] sm:$0xf]
      %v884 = vld [vmem:[%s881 + $0x8] sm:$0xf]
      %v885 = vld [vmem:[%s881 + $0xc] sm:$0xf]
      %v886 = vld [vmem:[%s881 + $0x10] sm:$0xf]
      %v887 = vld [vmem:[%s881 + $0x14] sm:$0xf]
      %v888 = vld [vmem:[%s881 + $0x18] sm:$0xf]
      %v889 = vld [vmem:[%s881 + $0x1c] sm:$0xf]
      %v890 = vld [vmem:[%s881 + $0x20] sm:$0xf]
      %v891 = vld [vmem:[%s881 + $0x24] sm:$0xf]
      %v892 = vld [vmem:[%s881 + $0x28] sm:$0xf]
      %v893 = vld [vmem:[%s881 + $0x2c] sm:$0xf]
      %v894 = vld [vmem:[%s881 + $0x30] sm:$0xf]
      %v895 = vld [vmem:[%s881 + $0x34] sm:$0xf]
      %v896 = vld [vmem:[%s881 + $0x38] sm:$0xf]
      %v897 = vld [vmem:[%s881 + $0x3c] sm:$0xf]
      %v930 = vunpack.c.l.b16 %v849
      %v931 = vunpack.c.l.b16 %v850
      %v932 = vunpack.c.l.b16 %v851
      %v933 = vunpack.c.l.b16 %v852
      %v934 = vunpack.c.l.b16 %v853
      %v935 = vunpack.c.l.b16 %v854
      %v936 = vunpack.c.l.b16 %v855
      %v937 = vunpack.c.l.b16 %v856
      %v938 = vunpack.c.l.b16 %v857
      %v939 = vunpack.c.l.b16 %v858
      %v940 = vunpack.c.l.b16 %v859
      %v941 = vunpack.c.l.b16 %v860
      %v942 = vunpack.c.l.b16 %v861
      %v943 = vunpack.c.l.b16 %v862
      %v944 = vunpack.c.l.b16 %v863
      %v945 = vunpack.c.l.b16 %v864
      %v946 = vunpack.c.l.b16 %v865
      %v947 = vunpack.c.l.b16 %v866
      %v948 = vunpack.c.l.b16 %v867
      %v949 = vunpack.c.l.b16 %v868
      %v950 = vunpack.c.l.b16 %v869
      %v951 = vunpack.c.l.b16 %v870
      %v952 = vunpack.c.l.b16 %v871
      %v953 = vunpack.c.l.b16 %v872
      %v954 = vunpack.c.l.b16 %v873
      %v955 = vunpack.c.l.b16 %v874
      %v956 = vunpack.c.l.b16 %v875
      %v957 = vunpack.c.l.b16 %v876
      %v958 = vunpack.c.l.b16 %v877
      %v959 = vunpack.c.l.b16 %v878
      %v960 = vunpack.c.l.b16 %v879
      %v961 = vunpack.c.l.b16 %v880
      %v962 = vpack.c.b16 %v931, %v930
      %v963 = vpack.c.b16 %v933, %v932
      %v964 = vpack.c.b16 %v935, %v934
      %v965 = vpack.c.b16 %v937, %v936
      %v966 = vpack.c.b16 %v939, %v938
      %v967 = vpack.c.b16 %v941, %v940
      %v968 = vpack.c.b16 %v943, %v942
      %v969 = vpack.c.b16 %v945, %v944
      %v970 = vpack.c.b16 %v947, %v946
      %v971 = vpack.c.b16 %v949, %v948
      %v972 = vpack.c.b16 %v951, %v950
      %v973 = vpack.c.b16 %v953, %v952
      %v974 = vpack.c.b16 %v955, %v954
      %v975 = vpack.c.b16 %v957, %v956
      %v976 = vpack.c.b16 %v959, %v958
      %v977 = vpack.c.b16 %v961, %v960
      %v1010 = vunpack.c.l.b16 %v882
      %v1011 = vunpack.c.l.b16 %v883
      %v1012 = vunpack.c.l.b16 %v884
      %v1013 = vunpack.c.l.b16 %v885
      %v1014 = vunpack.c.l.b16 %v886
      %v1015 = vunpack.c.l.b16 %v887
      %v1016 = vunpack.c.l.b16 %v888
      %v1017 = vunpack.c.l.b16 %v889
      %v1018 = vunpack.c.l.b16 %v890
      %v1019 = vunpack.c.l.b16 %v891
      %v1020 = vunpack.c.l.b16 %v892
      %v1021 = vunpack.c.l.b16 %v893
      %v1022 = vunpack.c.l.b16 %v894
      %v1023 = vunpack.c.l.b16 %v895
      %v1024 = vunpack.c.l.b16 %v896
      %v1025 = vunpack.c.l.b16 %v897
      %v1026 = vpack.c.b16 %v1011, %v1010
      %v1027 = vpack.c.b16 %v1013, %v1012
      %v1028 = vpack.c.b16 %v1015, %v1014
      %v1029 = vpack.c.b16 %v1017, %v1016
      %v1030 = vpack.c.b16 %v1019, %v1018
      %v1031 = vpack.c.b16 %v1021, %v1020
      %v1032 = vpack.c.b16 %v1023, %v1022
      %v1033 = vpack.c.b16 %v1025, %v1024
      %1042 = vmatpush.bf16.msra.mxu0 %v1033
      %1043 = vmatpush.bf16.msra.mxu0 %v1032
      %1044 = vmatpush.bf16.msra.mxu0 %v1031
      %1045 = vmatpush.bf16.msra.mxu0 %v1030
      %1046 = vmatpush.bf16.msra.mxu0 %v1029
      %1047 = vmatpush.bf16.msra.mxu0 %v1028
      %1048 = vmatpush.bf16.msra.mxu0 %v1027
      %1049 = vmatpush.bf16.msra.mxu0 %v1026
      %1050 = vmatmul.bf16.gmra.mxu0 %v962
      %v1051 = vpop.f32.mrf.mxu0
      %v1052 = vadd.f32 0.0, %v1051
      %v1053 = vpop.f32.mrf.mxu0
      %v1054 = vadd.f32 0.0, %v1053
      %1055 = vmatmul.bf16.gmra.mxu0 %v963
      %v1056 = vpop.f32.mrf.mxu0
      %v1057 = vadd.f32 0.0, %v1056
      %v1058 = vpop.f32.mrf.mxu0
      %v1059 = vadd.f32 0.0, %v1058
      %1060 = vmatmul.bf16.gmra.mxu0 %v964
      %v1061 = vpop.f32.mrf.mxu0
      %v1062 = vadd.f32 0.0, %v1061
      %v1063 = vpop.f32.mrf.mxu0
      %v1064 = vadd.f32 0.0, %v1063
      %1065 = vmatmul.bf16.gmra.mxu0 %v965
      %v1066 = vpop.f32.mrf.mxu0
      %v1067 = vadd.f32 0.0, %v1066
      %v1068 = vpop.f32.mrf.mxu0
      %v1069 = vadd.f32 0.0, %v1068
      %1070 = vmatmul.bf16.gmra.mxu0 %v966
      %v1071 = vpop.f32.mrf.mxu0
      %v1072 = vadd.f32 0.0, %v1071
      %v1073 = vpop.f32.mrf.mxu0
      %v1074 = vadd.f32 0.0, %v1073
      %1075 = vmatmul.bf16.gmra.mxu0 %v967
      %v1076 = vpop.f32.mrf.mxu0
      %v1077 = vadd.f32 0.0, %v1076
      %v1078 = vpop.f32.mrf.mxu0
      %v1079 = vadd.f32 0.0, %v1078
      %1080 = vmatmul.bf16.gmra.mxu0 %v968
      %v1081 = vpop.f32.mrf.mxu0
      %v1082 = vadd.f32 0.0, %v1081
      %v1083 = vpop.f32.mrf.mxu0
      %v1084 = vadd.f32 0.0, %v1083
      %1085 = vmatmul.bf16.gmra.mxu0 %v969
      %v1086 = vpop.f32.mrf.mxu0
      %v1087 = vadd.f32 0.0, %v1086
      %v1088 = vpop.f32.mrf.mxu0
      %v1089 = vadd.f32 0.0, %v1088
      %1090 = vmatmul.bf16.gmra.mxu0 %v970
      %v1091 = vpop.f32.mrf.mxu0
      %v1092 = vadd.f32 0.0, %v1091
      %v1093 = vpop.f32.mrf.mxu0
      %v1094 = vadd.f32 0.0, %v1093
      %1095 = vmatmul.bf16.gmra.mxu0 %v971
      %v1096 = vpop.f32.mrf.mxu0
      %v1097 = vadd.f32 0.0, %v1096
      %v1098 = vpop.f32.mrf.mxu0
      %v1099 = vadd.f32 0.0, %v1098
      %1100 = vmatmul.bf16.gmra.mxu0 %v972
      %v1101 = vpop.f32.mrf.mxu0
      %v1102 = vadd.f32 0.0, %v1101
      %v1103 = vpop.f32.mrf.mxu0
      %v1104 = vadd.f32 0.0, %v1103
      %1105 = vmatmul.bf16.gmra.mxu0 %v973
      %v1106 = vpop.f32.mrf.mxu0
      %v1107 = vadd.f32 0.0, %v1106
      %v1108 = vpop.f32.mrf.mxu0
      %v1109 = vadd.f32 0.0, %v1108
      %1110 = vmatmul.bf16.gmra.mxu0 %v974
      %v1111 = vpop.f32.mrf.mxu0
      %v1112 = vadd.f32 0.0, %v1111
      %v1113 = vpop.f32.mrf.mxu0
      %v1114 = vadd.f32 0.0, %v1113
      %1115 = vmatmul.bf16.gmra.mxu0 %v975
      %v1116 = vpop.f32.mrf.mxu0
      %v1117 = vadd.f32 0.0, %v1116
      %v1118 = vpop.f32.mrf.mxu0
      %v1119 = vadd.f32 0.0, %v1118
      %1120 = vmatmul.bf16.gmra.mxu0 %v976
      %v1121 = vpop.f32.mrf.mxu0
      %v1122 = vadd.f32 0.0, %v1121
      %v1123 = vpop.f32.mrf.mxu0
      %v1124 = vadd.f32 0.0, %v1123
      %1125 = vmatmul.bf16.gmra.mxu0 %v977
      %v1126 = vpop.f32.mrf.mxu0
      %v1127 = vadd.f32 0.0, %v1126
      %v1128 = vpop.f32.mrf.mxu0
      %v1129 = vadd.f32 0.0, %v1128
      %1130 = vdwg.mxu0
      %v1131 = vadd.f32 %v817, %v1052
      %v1132 = vadd.f32 %v818, %v1054
      %v1133 = vadd.f32 %v819, %v1057
      %v1134 = vadd.f32 %v820, %v1059
      %v1135 = vadd.f32 %v821, %v1062
      %v1136 = vadd.f32 %v822, %v1064
      %v1137 = vadd.f32 %v823, %v1067
      %v1138 = vadd.f32 %v824, %v1069
      %v1139 = vadd.f32 %v825, %v1072
      %v1140 = vadd.f32 %v826, %v1074
      %v1141 = vadd.f32 %v827, %v1077
      %v1142 = vadd.f32 %v828, %v1079
      %v1143 = vadd.f32 %v829, %v1082
      %v1144 = vadd.f32 %v830, %v1084
      %v1145 = vadd.f32 %v831, %v1087
      %v1146 = vadd.f32 %v832, %v1089
      %v1147 = vadd.f32 %v833, %v1092
      %v1148 = vadd.f32 %v834, %v1094
      %v1149 = vadd.f32 %v835, %v1097
      %v1150 = vadd.f32 %v836, %v1099
      %v1151 = vadd.f32 %v837, %v1102
      %v1152 = vadd.f32 %v838, %v1104
      %v1153 = vadd.f32 %v839, %v1107
      %v1154 = vadd.f32 %v840, %v1109
      %v1155 = vadd.f32 %v841, %v1112
      %v1156 = vadd.f32 %v842, %v1114
      %v1157 = vadd.f32 %v843, %v1117
      %v1158 = vadd.f32 %v844, %v1119
      %v1159 = vadd.f32 %v845, %v1122
      %v1160 = vadd.f32 %v846, %v1124
      %v1161 = vadd.f32 %v847, %v1127
      %v1162 = vadd.f32 %v848, %v1129
      %v1163 = vlaneseq
      %v1164 = vand.u32 %v1163, 127
      %vm1165 = vcmp.lt.s32.totalorder %v1164, 96
      %v1166 = vxor.u32 %v1131, 2147483648
      %v1167 = vxor.u32 %v1132, 2147483648
      %v1168 = vxor.u32 %v1133, 2147483648
      %v1169 = vxor.u32 %v1134, 2147483648
      %v1170 = vxor.u32 %v1135, 2147483648
      %v1171 = vxor.u32 %v1136, 2147483648
      %v1172 = vxor.u32 %v1137, 2147483648
      %v1173 = vxor.u32 %v1138, 2147483648
      %v1174 = vxor.u32 %v1139, 2147483648
      %v1175 = vxor.u32 %v1140, 2147483648
      %v1176 = vxor.u32 %v1141, 2147483648
      %v1177 = vxor.u32 %v1142, 2147483648
      %v1178 = vxor.u32 %v1143, 2147483648
      %v1179 = vxor.u32 %v1144, 2147483648
      %v1180 = vxor.u32 %v1145, 2147483648
      %v1181 = vxor.u32 %v1146, 2147483648
      %v1182 = vxor.u32 %v1147, 2147483648
      %v1183 = vxor.u32 %v1148, 2147483648
      %v1184 = vxor.u32 %v1149, 2147483648
      %v1185 = vxor.u32 %v1150, 2147483648
      %v1186 = vxor.u32 %v1151, 2147483648
      %v1187 = vxor.u32 %v1152, 2147483648
      %v1188 = vxor.u32 %v1153, 2147483648
      %v1189 = vxor.u32 %v1154, 2147483648
      %v1190 = vxor.u32 %v1155, 2147483648
      %v1191 = vxor.u32 %v1156, 2147483648
      %v1192 = vxor.u32 %v1157, 2147483648
      %v1193 = vxor.u32 %v1158, 2147483648
      %v1194 = vxor.u32 %v1159, 2147483648
      %v1195 = vxor.u32 %v1160, 2147483648
      %v1196 = vxor.u32 %v1161, 2147483648
      %v1197 = vxor.u32 %v1162, 2147483648
      %v1198 = vmul.f32 %v1166, 1.442695
      %v1199 = vpow.pop %v1198
      %v1200 = vmul.f32 %v1167, 1.442695
      %v1201 = vpow.pop %v1200
      %v1202 = vmul.f32 %v1168, 1.442695
      %v1203 = vpow.pop %v1202
      %v1204 = vmul.f32 %v1169, 1.442695
      %v1205 = vpow.pop %v1204
      %v1206 = vmul.f32 %v1170, 1.442695
      %v1207 = vpow.pop %v1206
      %v1208 = vmul.f32 %v1171, 1.442695
      %v1209 = vpow.pop %v1208
      %v1210 = vmul.f32 %v1172, 1.442695
      %v1211 = vpow.pop %v1210
      %v1212 = vmul.f32 %v1173, 1.442695
      %v1213 = vpow.pop %v1212
      %v1214 = vmul.f32 %v1174, 1.442695
      %v1215 = vpow.pop %v1214
      %v1216 = vmul.f32 %v1175, 1.442695
      %v1217 = vpow.pop %v1216
      %v1218 = vmul.f32 %v1176, 1.442695
      %v1219 = vpow.pop %v1218
      %v1220 = vmul.f32 %v1177, 1.442695
      %v1221 = vpow.pop %v1220
      %v1222 = vmul.f32 %v1178, 1.442695
      %v1223 = vpow.pop %v1222
      %v1224 = vmul.f32 %v1179, 1.442695
      %v1225 = vpow.pop %v1224
      %v1226 = vmul.f32 %v1180, 1.442695
      %v1227 = vpow.pop %v1226
      %v1228 = vmul.f32 %v1181, 1.442695
      %v1229 = vpow.pop %v1228
      %v1230 = vmul.f32 %v1182, 1.442695
      %v1231 = vpow.pop %v1230
      %v1232 = vmul.f32 %v1183, 1.442695
      %v1233 = vpow.pop %v1232
      %v1234 = vmul.f32 %v1184, 1.442695
      %v1235 = vpow.pop %v1234
      %v1236 = vmul.f32 %v1185, 1.442695
      %v1237 = vpow.pop %v1236
      %v1238 = vmul.f32 %v1186, 1.442695
      %v1239 = vpow.pop %v1238
      %v1240 = vmul.f32 %v1187, 1.442695
      %v1241 = vpow.pop %v1240
      %v1242 = vmul.f32 %v1188, 1.442695
      %v1243 = vpow.pop %v1242
      %v1244 = vmul.f32 %v1189, 1.442695
      %v1245 = vpow.pop %v1244
      %v1246 = vmul.f32 %v1190, 1.442695
      %v1247 = vpow.pop %v1246
      %v1248 = vmul.f32 %v1191, 1.442695
      %v1249 = vpow.pop %v1248
      %v1250 = vmul.f32 %v1192, 1.442695
      %v1251 = vpow.pop %v1250
      %v1252 = vmul.f32 %v1193, 1.442695
      %v1253 = vpow.pop %v1252
      %v1254 = vmul.f32 %v1194, 1.442695
      %v1255 = vpow.pop %v1254
      %v1256 = vmul.f32 %v1195, 1.442695
      %v1257 = vpow.pop %v1256
      %v1258 = vmul.f32 %v1196, 1.442695
      %v1259 = vpow.pop %v1258
      %v1260 = vmul.f32 %v1197, 1.442695
      %v1261 = vpow.pop %v1260
      %v1262 = vadd.f32 %v1199, 1.0
      %v1263 = vadd.f32 %v1201, 1.0
      %v1264 = vadd.f32 %v1203, 1.0
      %v1265 = vadd.f32 %v1205, 1.0
      %v1266 = vadd.f32 %v1207, 1.0
      %v1267 = vadd.f32 %v1209, 1.0
      %v1268 = vadd.f32 %v1211, 1.0
      %v1269 = vadd.f32 %v1213, 1.0
      %v1270 = vadd.f32 %v1215, 1.0
      %v1271 = vadd.f32 %v1217, 1.0
      %v1272 = vadd.f32 %v1219, 1.0
      %v1273 = vadd.f32 %v1221, 1.0
      %v1274 = vadd.f32 %v1223, 1.0
      %v1275 = vadd.f32 %v1225, 1.0
      %v1276 = vadd.f32 %v1227, 1.0
      %v1277 = vadd.f32 %v1229, 1.0
      %v1278 = vadd.f32 %v1231, 1.0
      %v1279 = vadd.f32 %v1233, 1.0
      %v1280 = vadd.f32 %v1235, 1.0
      %v1281 = vadd.f32 %v1237, 1.0
      %v1282 = vadd.f32 %v1239, 1.0
      %v1283 = vadd.f32 %v1241, 1.0
      %v1284 = vadd.f32 %v1243, 1.0
      %v1285 = vadd.f32 %v1245, 1.0
      %v1286 = vadd.f32 %v1247, 1.0
      %v1287 = vadd.f32 %v1249, 1.0
      %v1288 = vadd.f32 %v1251, 1.0
      %v1289 = vadd.f32 %v1253, 1.0
      %v1290 = vadd.f32 %v1255, 1.0
      %v1291 = vadd.f32 %v1257, 1.0
      %v1292 = vadd.f32 %v1259, 1.0
      %v1293 = vadd.f32 %v1261, 1.0
      %v1294 = vrcp.pop %v1262
      %v1295 = vmul.f32 %v1262, %v1294
      %v1296 = vsub.f32 1.0, %v1295
      %v1297 = vmul.f32 %v1294, %v1296
      %v1298 = vadd.f32 %v1294, %v1297
      %vm1299 = vweird.f32 %v1262
      %vm1300 = vweird.f32 %v1294
      %vm1301 = vmor %vm1299, %vm1300
      %v1302 = vsel %vm1301, %v1294, %v1298
      %v1303 = vand.u32 2147483647, %v1262
      %vm1304 = vcmp.eq.f32.partialorder %v1303, 8.507059e+37
      %v1305 = vand.u32 %v1262, 2147483648
      %v1306 = vor.u32 1.1754944e-38, %v1305
      %v1307 = vsel %vm1304, %v1306, %v1302
      %v1308 = vmul.f32 1.0, %v1307
      %v1309 = vrcp.pop %v1263
      %v1310 = vmul.f32 %v1263, %v1309
      %v1311 = vsub.f32 1.0, %v1310
      %v1312 = vmul.f32 %v1309, %v1311
      %v1313 = vadd.f32 %v1309, %v1312
      %vm1314 = vweird.f32 %v1263
      %vm1315 = vweird.f32 %v1309
      %vm1316 = vmor %vm1314, %vm1315
      %v1317 = vsel %vm1316, %v1309, %v1313
      %v1318 = vand.u32 2147483647, %v1263
      %vm1319 = vcmp.eq.f32.partialorder %v1318, 8.507059e+37
      %v1320 = vand.u32 %v1263, 2147483648
      %v1321 = vor.u32 1.1754944e-38, %v1320
      %v1322 = vsel %vm1319, %v1321, %v1317
      %v1323 = vmul.f32 1.0, %v1322
      %v1324 = vrcp.pop %v1264
      %v1325 = vmul.f32 %v1264, %v1324
      %v1326 = vsub.f32 1.0, %v1325
      %v1327 = vmul.f32 %v1324, %v1326
      %v1328 = vadd.f32 %v1324, %v1327
      %vm1329 = vweird.f32 %v1264
      %vm1330 = vweird.f32 %v1324
      %vm1331 = vmor %vm1329, %vm1330
      %v1332 = vsel %vm1331, %v1324, %v1328
      %v1333 = vand.u32 2147483647, %v1264
      %vm1334 = vcmp.eq.f32.partialorder %v1333, 8.507059e+37
      %v1335 = vand.u32 %v1264, 2147483648
      %v1336 = vor.u32 1.1754944e-38, %v1335
      %v1337 = vsel %vm1334, %v1336, %v1332
      %v1338 = vmul.f32 1.0, %v1337
      %v1339 = vrcp.pop %v1265
      %v1340 = vmul.f32 %v1265, %v1339
      %v1341 = vsub.f32 1.0, %v1340
      %v1342 = vmul.f32 %v1339, %v1341
      %v1343 = vadd.f32 %v1339, %v1342
      %vm1344 = vweird.f32 %v1265
      %vm1345 = vweird.f32 %v1339
      %vm1346 = vmor %vm1344, %vm1345
      %v1347 = vsel %vm1346, %v1339, %v1343
      %v1348 = vand.u32 2147483647, %v1265
      %vm1349 = vcmp.eq.f32.partialorder %v1348, 8.507059e+37
      %v1350 = vand.u32 %v1265, 2147483648
      %v1351 = vor.u32 1.1754944e-38, %v1350
      %v1352 = vsel %vm1349, %v1351, %v1347
      %v1353 = vmul.f32 1.0, %v1352
      %v1354 = vrcp.pop %v1266
      %v1355 = vmul.f32 %v1266, %v1354
      %v1356 = vsub.f32 1.0, %v1355
      %v1357 = vmul.f32 %v1354, %v1356
      %v1358 = vadd.f32 %v1354, %v1357
      %vm1359 = vweird.f32 %v1266
      %vm1360 = vweird.f32 %v1354
      %vm1361 = vmor %vm1359, %vm1360
      %v1362 = vsel %vm1361, %v1354, %v1358
      %v1363 = vand.u32 2147483647, %v1266
      %vm1364 = vcmp.eq.f32.partialorder %v1363, 8.507059e+37
      %v1365 = vand.u32 %v1266, 2147483648
      %v1366 = vor.u32 1.1754944e-38, %v1365
      %v1367 = vsel %vm1364, %v1366, %v1362
      %v1368 = vmul.f32 1.0, %v1367
      %v1369 = vrcp.pop %v1267
      %v1370 = vmul.f32 %v1267, %v1369
      %v1371 = vsub.f32 1.0, %v1370
      %v1372 = vmul.f32 %v1369, %v1371
      %v1373 = vadd.f32 %v1369, %v1372
      %vm1374 = vweird.f32 %v1267
      %vm1375 = vweird.f32 %v1369
      %vm1376 = vmor %vm1374, %vm1375
      %v1377 = vsel %vm1376, %v1369, %v1373
      %v1378 = vand.u32 2147483647, %v1267
      %vm1379 = vcmp.eq.f32.partialorder %v1378, 8.507059e+37
      %v1380 = vand.u32 %v1267, 2147483648
      %v1381 = vor.u32 1.1754944e-38, %v1380
      %v1382 = vsel %vm1379, %v1381, %v1377
      %v1383 = vmul.f32 1.0, %v1382
      %v1384 = vrcp.pop %v1268
      %v1385 = vmul.f32 %v1268, %v1384
      %v1386 = vsub.f32 1.0, %v1385
      %v1387 = vmul.f32 %v1384, %v1386
      %v1388 = vadd.f32 %v1384, %v1387
      %vm1389 = vweird.f32 %v1268
      %vm1390 = vweird.f32 %v1384
      %vm1391 = vmor %vm1389, %vm1390
      %v1392 = vsel %vm1391, %v1384, %v1388
      %v1393 = vand.u32 2147483647, %v1268
      %vm1394 = vcmp.eq.f32.partialorder %v1393, 8.507059e+37
      %v1395 = vand.u32 %v1268, 2147483648
      %v1396 = vor.u32 1.1754944e-38, %v1395
      %v1397 = vsel %vm1394, %v1396, %v1392
      %v1398 = vmul.f32 1.0, %v1397
      %v1399 = vrcp.pop %v1269
      %v1400 = vmul.f32 %v1269, %v1399
      %v1401 = vsub.f32 1.0, %v1400
      %v1402 = vmul.f32 %v1399, %v1401
      %v1403 = vadd.f32 %v1399, %v1402
      %vm1404 = vweird.f32 %v1269
      %vm1405 = vweird.f32 %v1399
      %vm1406 = vmor %vm1404, %vm1405
      %v1407 = vsel %vm1406, %v1399, %v1403
      %v1408 = vand.u32 2147483647, %v1269
      %vm1409 = vcmp.eq.f32.partialorder %v1408, 8.507059e+37
      %v1410 = vand.u32 %v1269, 2147483648
      %v1411 = vor.u32 1.1754944e-38, %v1410
      %v1412 = vsel %vm1409, %v1411, %v1407
      %v1413 = vmul.f32 1.0, %v1412
      %v1414 = vrcp.pop %v1270
      %v1415 = vmul.f32 %v1270, %v1414
      %v1416 = vsub.f32 1.0, %v1415
      %v1417 = vmul.f32 %v1414, %v1416
      %v1418 = vadd.f32 %v1414, %v1417
      %vm1419 = vweird.f32 %v1270
      %vm1420 = vweird.f32 %v1414
      %vm1421 = vmor %vm1419, %vm1420
      %v1422 = vsel %vm1421, %v1414, %v1418
      %v1423 = vand.u32 2147483647, %v1270
      %vm1424 = vcmp.eq.f32.partialorder %v1423, 8.507059e+37
      %v1425 = vand.u32 %v1270, 2147483648
      %v1426 = vor.u32 1.1754944e-38, %v1425
      %v1427 = vsel %vm1424, %v1426, %v1422
      %v1428 = vmul.f32 1.0, %v1427
      %v1429 = vrcp.pop %v1271
      %v1430 = vmul.f32 %v1271, %v1429
      %v1431 = vsub.f32 1.0, %v1430
      %v1432 = vmul.f32 %v1429, %v1431
      %v1433 = vadd.f32 %v1429, %v1432
      %vm1434 = vweird.f32 %v1271
      %vm1435 = vweird.f32 %v1429
      %vm1436 = vmor %vm1434, %vm1435
      %v1437 = vsel %vm1436, %v1429, %v1433
      %v1438 = vand.u32 2147483647, %v1271
      %vm1439 = vcmp.eq.f32.partialorder %v1438, 8.507059e+37
      %v1440 = vand.u32 %v1271, 2147483648
      %v1441 = vor.u32 1.1754944e-38, %v1440
      %v1442 = vsel %vm1439, %v1441, %v1437
      %v1443 = vmul.f32 1.0, %v1442
      %v1444 = vrcp.pop %v1272
      %v1445 = vmul.f32 %v1272, %v1444
      %v1446 = vsub.f32 1.0, %v1445
      %v1447 = vmul.f32 %v1444, %v1446
      %v1448 = vadd.f32 %v1444, %v1447
      %vm1449 = vweird.f32 %v1272
      %vm1450 = vweird.f32 %v1444
      %vm1451 = vmor %vm1449, %vm1450
      %v1452 = vsel %vm1451, %v1444, %v1448
      %v1453 = vand.u32 2147483647, %v1272
      %vm1454 = vcmp.eq.f32.partialorder %v1453, 8.507059e+37
      %v1455 = vand.u32 %v1272, 2147483648
      %v1456 = vor.u32 1.1754944e-38, %v1455
      %v1457 = vsel %vm1454, %v1456, %v1452
      %v1458 = vmul.f32 1.0, %v1457
      %v1459 = vrcp.pop %v1273
      %v1460 = vmul.f32 %v1273, %v1459
      %v1461 = vsub.f32 1.0, %v1460
      %v1462 = vmul.f32 %v1459, %v1461
      %v1463 = vadd.f32 %v1459, %v1462
      %vm1464 = vweird.f32 %v1273
      %vm1465 = vweird.f32 %v1459
      %vm1466 = vmor %vm1464, %vm1465
      %v1467 = vsel %vm1466, %v1459, %v1463
      %v1468 = vand.u32 2147483647, %v1273
      %vm1469 = vcmp.eq.f32.partialorder %v1468, 8.507059e+37
      %v1470 = vand.u32 %v1273, 2147483648
      %v1471 = vor.u32 1.1754944e-38, %v1470
      %v1472 = vsel %vm1469, %v1471, %v1467
      %v1473 = vmul.f32 1.0, %v1472
      %v1474 = vrcp.pop %v1274
      %v1475 = vmul.f32 %v1274, %v1474
      %v1476 = vsub.f32 1.0, %v1475
      %v1477 = vmul.f32 %v1474, %v1476
      %v1478 = vadd.f32 %v1474, %v1477
      %vm1479 = vweird.f32 %v1274
      %vm1480 = vweird.f32 %v1474
      %vm1481 = vmor %vm1479, %vm1480
      %v1482 = vsel %vm1481, %v1474, %v1478
      %v1483 = vand.u32 2147483647, %v1274
      %vm1484 = vcmp.eq.f32.partialorder %v1483, 8.507059e+37
      %v1485 = vand.u32 %v1274, 2147483648
      %v1486 = vor.u32 1.1754944e-38, %v1485
      %v1487 = vsel %vm1484, %v1486, %v1482
      %v1488 = vmul.f32 1.0, %v1487
      %v1489 = vrcp.pop %v1275
      %v1490 = vmul.f32 %v1275, %v1489
      %v1491 = vsub.f32 1.0, %v1490
      %v1492 = vmul.f32 %v1489, %v1491
      %v1493 = vadd.f32 %v1489, %v1492
      %vm1494 = vweird.f32 %v1275
      %vm1495 = vweird.f32 %v1489
      %vm1496 = vmor %vm1494, %vm1495
      %v1497 = vsel %vm1496, %v1489, %v1493
      %v1498 = vand.u32 2147483647, %v1275
      %vm1499 = vcmp.eq.f32.partialorder %v1498, 8.507059e+37
      %v1500 = vand.u32 %v1275, 2147483648
      %v1501 = vor.u32 1.1754944e-38, %v1500
      %v1502 = vsel %vm1499, %v1501, %v1497
      %v1503 = vmul.f32 1.0, %v1502
      %v1504 = vrcp.pop %v1276
      %v1505 = vmul.f32 %v1276, %v1504
      %v1506 = vsub.f32 1.0, %v1505
      %v1507 = vmul.f32 %v1504, %v1506
      %v1508 = vadd.f32 %v1504, %v1507
      %vm1509 = vweird.f32 %v1276
      %vm1510 = vweird.f32 %v1504
      %vm1511 = vmor %vm1509, %vm1510
      %v1512 = vsel %vm1511, %v1504, %v1508
      %v1513 = vand.u32 2147483647, %v1276
      %vm1514 = vcmp.eq.f32.partialorder %v1513, 8.507059e+37
      %v1515 = vand.u32 %v1276, 2147483648
      %v1516 = vor.u32 1.1754944e-38, %v1515
      %v1517 = vsel %vm1514, %v1516, %v1512
      %v1518 = vmul.f32 1.0, %v1517
      %v1519 = vrcp.pop %v1277
      %v1520 = vmul.f32 %v1277, %v1519
      %v1521 = vsub.f32 1.0, %v1520
      %v1522 = vmul.f32 %v1519, %v1521
      %v1523 = vadd.f32 %v1519, %v1522
      %vm1524 = vweird.f32 %v1277
      %vm1525 = vweird.f32 %v1519
      %vm1526 = vmor %vm1524, %vm1525
      %v1527 = vsel %vm1526, %v1519, %v1523
      %v1528 = vand.u32 2147483647, %v1277
      %vm1529 = vcmp.eq.f32.partialorder %v1528, 8.507059e+37
      %v1530 = vand.u32 %v1277, 2147483648
      %v1531 = vor.u32 1.1754944e-38, %v1530
      %v1532 = vsel %vm1529, %v1531, %v1527
      %v1533 = vmul.f32 1.0, %v1532
      %v1534 = vrcp.pop %v1278
      %v1535 = vmul.f32 %v1278, %v1534
      %v1536 = vsub.f32 1.0, %v1535
      %v1537 = vmul.f32 %v1534, %v1536
      %v1538 = vadd.f32 %v1534, %v1537
      %vm1539 = vweird.f32 %v1278
      %vm1540 = vweird.f32 %v1534
      %vm1541 = vmor %vm1539, %vm1540
      %v1542 = vsel %vm1541, %v1534, %v1538
      %v1543 = vand.u32 2147483647, %v1278
      %vm1544 = vcmp.eq.f32.partialorder %v1543, 8.507059e+37
      %v1545 = vand.u32 %v1278, 2147483648
      %v1546 = vor.u32 1.1754944e-38, %v1545
      %v1547 = vsel %vm1544, %v1546, %v1542
      %v1548 = vmul.f32 1.0, %v1547
      %v1549 = vrcp.pop %v1279
      %v1550 = vmul.f32 %v1279, %v1549
      %v1551 = vsub.f32 1.0, %v1550
      %v1552 = vmul.f32 %v1549, %v1551
      %v1553 = vadd.f32 %v1549, %v1552
      %vm1554 = vweird.f32 %v1279
      %vm1555 = vweird.f32 %v1549
      %vm1556 = vmor %vm1554, %vm1555
      %v1557 = vsel %vm1556, %v1549, %v1553
      %v1558 = vand.u32 2147483647, %v1279
      %vm1559 = vcmp.eq.f32.partialorder %v1558, 8.507059e+37
      %v1560 = vand.u32 %v1279, 2147483648
      %v1561 = vor.u32 1.1754944e-38, %v1560
      %v1562 = vsel %vm1559, %v1561, %v1557
      %v1563 = vmul.f32 1.0, %v1562
      %v1564 = vrcp.pop %v1280
      %v1565 = vmul.f32 %v1280, %v1564
      %v1566 = vsub.f32 1.0, %v1565
      %v1567 = vmul.f32 %v1564, %v1566
      %v1568 = vadd.f32 %v1564, %v1567
      %vm1569 = vweird.f32 %v1280
      %vm1570 = vweird.f32 %v1564
      %vm1571 = vmor %vm1569, %vm1570
      %v1572 = vsel %vm1571, %v1564, %v1568
      %v1573 = vand.u32 2147483647, %v1280
      %vm1574 = vcmp.eq.f32.partialorder %v1573, 8.507059e+37
      %v1575 = vand.u32 %v1280, 2147483648
      %v1576 = vor.u32 1.1754944e-38, %v1575
      %v1577 = vsel %vm1574, %v1576, %v1572
      %v1578 = vmul.f32 1.0, %v1577
      %v1579 = vrcp.pop %v1281
      %v1580 = vmul.f32 %v1281, %v1579
      %v1581 = vsub.f32 1.0, %v1580
      %v1582 = vmul.f32 %v1579, %v1581
      %v1583 = vadd.f32 %v1579, %v1582
      %vm1584 = vweird.f32 %v1281
      %vm1585 = vweird.f32 %v1579
      %vm1586 = vmor %vm1584, %vm1585
      %v1587 = vsel %vm1586, %v1579, %v1583
      %v1588 = vand.u32 2147483647, %v1281
      %vm1589 = vcmp.eq.f32.partialorder %v1588, 8.507059e+37
      %v1590 = vand.u32 %v1281, 2147483648
      %v1591 = vor.u32 1.1754944e-38, %v1590
      %v1592 = vsel %vm1589, %v1591, %v1587
      %v1593 = vmul.f32 1.0, %v1592
      %v1594 = vrcp.pop %v1282
      %v1595 = vmul.f32 %v1282, %v1594
      %v1596 = vsub.f32 1.0, %v1595
      %v1597 = vmul.f32 %v1594, %v1596
      %v1598 = vadd.f32 %v1594, %v1597
      %vm1599 = vweird.f32 %v1282
      %vm1600 = vweird.f32 %v1594
      %vm1601 = vmor %vm1599, %vm1600
      %v1602 = vsel %vm1601, %v1594, %v1598
      %v1603 = vand.u32 2147483647, %v1282
      %vm1604 = vcmp.eq.f32.partialorder %v1603, 8.507059e+37
      %v1605 = vand.u32 %v1282, 2147483648
      %v1606 = vor.u32 1.1754944e-38, %v1605
      %v1607 = vsel %vm1604, %v1606, %v1602
      %v1608 = vmul.f32 1.0, %v1607
      %v1609 = vrcp.pop %v1283
      %v1610 = vmul.f32 %v1283, %v1609
      %v1611 = vsub.f32 1.0, %v1610
      %v1612 = vmul.f32 %v1609, %v1611
      %v1613 = vadd.f32 %v1609, %v1612
      %vm1614 = vweird.f32 %v1283
      %vm1615 = vweird.f32 %v1609
      %vm1616 = vmor %vm1614, %vm1615
      %v1617 = vsel %vm1616, %v1609, %v1613
      %v1618 = vand.u32 2147483647, %v1283
      %vm1619 = vcmp.eq.f32.partialorder %v1618, 8.507059e+37
      %v1620 = vand.u32 %v1283, 2147483648
      %v1621 = vor.u32 1.1754944e-38, %v1620
      %v1622 = vsel %vm1619, %v1621, %v1617
      %v1623 = vmul.f32 1.0, %v1622
      %v1624 = vrcp.pop %v1284
      %v1625 = vmul.f32 %v1284, %v1624
      %v1626 = vsub.f32 1.0, %v1625
      %v1627 = vmul.f32 %v1624, %v1626
      %v1628 = vadd.f32 %v1624, %v1627
      %vm1629 = vweird.f32 %v1284
      %vm1630 = vweird.f32 %v1624
      %vm1631 = vmor %vm1629, %vm1630
      %v1632 = vsel %vm1631, %v1624, %v1628
      %v1633 = vand.u32 2147483647, %v1284
      %vm1634 = vcmp.eq.f32.partialorder %v1633, 8.507059e+37
      %v1635 = vand.u32 %v1284, 2147483648
      %v1636 = vor.u32 1.1754944e-38, %v1635
      %v1637 = vsel %vm1634, %v1636, %v1632
      %v1638 = vmul.f32 1.0, %v1637
      %v1639 = vrcp.pop %v1285
      %v1640 = vmul.f32 %v1285, %v1639
      %v1641 = vsub.f32 1.0, %v1640
      %v1642 = vmul.f32 %v1639, %v1641
      %v1643 = vadd.f32 %v1639, %v1642
      %vm1644 = vweird.f32 %v1285
      %vm1645 = vweird.f32 %v1639
      %vm1646 = vmor %vm1644, %vm1645
      %v1647 = vsel %vm1646, %v1639, %v1643
      %v1648 = vand.u32 2147483647, %v1285
      %vm1649 = vcmp.eq.f32.partialorder %v1648, 8.507059e+37
      %v1650 = vand.u32 %v1285, 2147483648
      %v1651 = vor.u32 1.1754944e-38, %v1650
      %v1652 = vsel %vm1649, %v1651, %v1647
      %v1653 = vmul.f32 1.0, %v1652
      %v1654 = vrcp.pop %v1286
      %v1655 = vmul.f32 %v1286, %v1654
      %v1656 = vsub.f32 1.0, %v1655
      %v1657 = vmul.f32 %v1654, %v1656
      %v1658 = vadd.f32 %v1654, %v1657
      %vm1659 = vweird.f32 %v1286
      %vm1660 = vweird.f32 %v1654
      %vm1661 = vmor %vm1659, %vm1660
      %v1662 = vsel %vm1661, %v1654, %v1658
      %v1663 = vand.u32 2147483647, %v1286
      %vm1664 = vcmp.eq.f32.partialorder %v1663, 8.507059e+37
      %v1665 = vand.u32 %v1286, 2147483648
      %v1666 = vor.u32 1.1754944e-38, %v1665
      %v1667 = vsel %vm1664, %v1666, %v1662
      %v1668 = vmul.f32 1.0, %v1667
      %v1669 = vrcp.pop %v1287
      %v1670 = vmul.f32 %v1287, %v1669
      %v1671 = vsub.f32 1.0, %v1670
      %v1672 = vmul.f32 %v1669, %v1671
      %v1673 = vadd.f32 %v1669, %v1672
      %vm1674 = vweird.f32 %v1287
      %vm1675 = vweird.f32 %v1669
      %vm1676 = vmor %vm1674, %vm1675
      %v1677 = vsel %vm1676, %v1669, %v1673
      %v1678 = vand.u32 2147483647, %v1287
      %vm1679 = vcmp.eq.f32.partialorder %v1678, 8.507059e+37
      %v1680 = vand.u32 %v1287, 2147483648
      %v1681 = vor.u32 1.1754944e-38, %v1680
      %v1682 = vsel %vm1679, %v1681, %v1677
      %v1683 = vmul.f32 1.0, %v1682
      %v1684 = vrcp.pop %v1288
      %v1685 = vmul.f32 %v1288, %v1684
      %v1686 = vsub.f32 1.0, %v1685
      %v1687 = vmul.f32 %v1684, %v1686
      %v1688 = vadd.f32 %v1684, %v1687
      %vm1689 = vweird.f32 %v1288
      %vm1690 = vweird.f32 %v1684
      %vm1691 = vmor %vm1689, %vm1690
      %v1692 = vsel %vm1691, %v1684, %v1688
      %v1693 = vand.u32 2147483647, %v1288
      %vm1694 = vcmp.eq.f32.partialorder %v1693, 8.507059e+37
      %v1695 = vand.u32 %v1288, 2147483648
      %v1696 = vor.u32 1.1754944e-38, %v1695
      %v1697 = vsel %vm1694, %v1696, %v1692
      %v1698 = vmul.f32 1.0, %v1697
      %v1699 = vrcp.pop %v1289
      %v1700 = vmul.f32 %v1289, %v1699
      %v1701 = vsub.f32 1.0, %v1700
      %v1702 = vmul.f32 %v1699, %v1701
      %v1703 = vadd.f32 %v1699, %v1702
      %vm1704 = vweird.f32 %v1289
      %vm1705 = vweird.f32 %v1699
      %vm1706 = vmor %vm1704, %vm1705
      %v1707 = vsel %vm1706, %v1699, %v1703
      %v1708 = vand.u32 2147483647, %v1289
      %vm1709 = vcmp.eq.f32.partialorder %v1708, 8.507059e+37
      %v1710 = vand.u32 %v1289, 2147483648
      %v1711 = vor.u32 1.1754944e-38, %v1710
      %v1712 = vsel %vm1709, %v1711, %v1707
      %v1713 = vmul.f32 1.0, %v1712
      %v1714 = vrcp.pop %v1290
      %v1715 = vmul.f32 %v1290, %v1714
      %v1716 = vsub.f32 1.0, %v1715
      %v1717 = vmul.f32 %v1714, %v1716
      %v1718 = vadd.f32 %v1714, %v1717
      %vm1719 = vweird.f32 %v1290
      %vm1720 = vweird.f32 %v1714
      %vm1721 = vmor %vm1719, %vm1720
      %v1722 = vsel %vm1721, %v1714, %v1718
      %v1723 = vand.u32 2147483647, %v1290
      %vm1724 = vcmp.eq.f32.partialorder %v1723, 8.507059e+37
      %v1725 = vand.u32 %v1290, 2147483648
      %v1726 = vor.u32 1.1754944e-38, %v1725
      %v1727 = vsel %vm1724, %v1726, %v1722
      %v1728 = vmul.f32 1.0, %v1727
      %v1729 = vrcp.pop %v1291
      %v1730 = vmul.f32 %v1291, %v1729
      %v1731 = vsub.f32 1.0, %v1730
      %v1732 = vmul.f32 %v1729, %v1731
      %v1733 = vadd.f32 %v1729, %v1732
      %vm1734 = vweird.f32 %v1291
      %vm1735 = vweird.f32 %v1729
      %vm1736 = vmor %vm1734, %vm1735
      %v1737 = vsel %vm1736, %v1729, %v1733
      %v1738 = vand.u32 2147483647, %v1291
      %vm1739 = vcmp.eq.f32.partialorder %v1738, 8.507059e+37
      %v1740 = vand.u32 %v1291, 2147483648
      %v1741 = vor.u32 1.1754944e-38, %v1740
      %v1742 = vsel %vm1739, %v1741, %v1737
      %v1743 = vmul.f32 1.0, %v1742
      %v1744 = vrcp.pop %v1292
      %v1745 = vmul.f32 %v1292, %v1744
      %v1746 = vsub.f32 1.0, %v1745
      %v1747 = vmul.f32 %v1744, %v1746
      %v1748 = vadd.f32 %v1744, %v1747
      %vm1749 = vweird.f32 %v1292
      %vm1750 = vweird.f32 %v1744
      %vm1751 = vmor %vm1749, %vm1750
      %v1752 = vsel %vm1751, %v1744, %v1748
      %v1753 = vand.u32 2147483647, %v1292
      %vm1754 = vcmp.eq.f32.partialorder %v1753, 8.507059e+37
      %v1755 = vand.u32 %v1292, 2147483648
      %v1756 = vor.u32 1.1754944e-38, %v1755
      %v1757 = vsel %vm1754, %v1756, %v1752
      %v1758 = vmul.f32 1.0, %v1757
      %v1759 = vrcp.pop %v1293
      %v1760 = vmul.f32 %v1293, %v1759
      %v1761 = vsub.f32 1.0, %v1760
      %v1762 = vmul.f32 %v1759, %v1761
      %v1763 = vadd.f32 %v1759, %v1762
      %vm1764 = vweird.f32 %v1293
      %vm1765 = vweird.f32 %v1759
      %vm1766 = vmor %vm1764, %vm1765
      %v1767 = vsel %vm1766, %v1759, %v1763
      %v1768 = vand.u32 2147483647, %v1293
      %vm1769 = vcmp.eq.f32.partialorder %v1768, 8.507059e+37
      %v1770 = vand.u32 %v1293, 2147483648
      %v1771 = vor.u32 1.1754944e-38, %v1770
      %v1772 = vsel %vm1769, %v1771, %v1767
      %v1773 = vmul.f32 1.0, %v1772
      %v1774 = vtanh.pop %v1131
      %v1775 = vtanh.pop %v1132
      %v1776 = vtanh.pop %v1133
      %v1777 = vtanh.pop %v1134
      %v1778 = vtanh.pop %v1135
      %v1779 = vtanh.pop %v1136
      %v1780 = vtanh.pop %v1137
      %v1781 = vtanh.pop %v1138
      %v1782 = vtanh.pop %v1139
      %v1783 = vtanh.pop %v1140
      %v1784 = vtanh.pop %v1141
      %v1785 = vtanh.pop %v1142
      %v1786 = vtanh.pop %v1143
      %v1787 = vtanh.pop %v1144
      %v1788 = vtanh.pop %v1145
      %v1789 = vtanh.pop %v1146
      %v1790 = vtanh.pop %v1147
      %v1791 = vtanh.pop %v1148
      %v1792 = vtanh.pop %v1149
      %v1793 = vtanh.pop %v1150
      %v1794 = vtanh.pop %v1151
      %v1795 = vtanh.pop %v1152
      %v1796 = vtanh.pop %v1153
      %v1797 = vtanh.pop %v1154
      %v1798 = vtanh.pop %v1155
      %v1799 = vtanh.pop %v1156
      %v1800 = vtanh.pop %v1157
      %v1801 = vtanh.pop %v1158
      %v1802 = vtanh.pop %v1159
      %v1803 = vtanh.pop %v1160
      %v1804 = vtanh.pop %v1161
      %v1805 = vtanh.pop %v1162
      %v1806 = vsel %vm1165, %v1308, %v1774
      %v1807 = vsel %vm1165, %v1323, %v1775
      %v1808 = vsel %vm1165, %v1338, %v1776
      %v1809 = vsel %vm1165, %v1353, %v1777
      %v1810 = vsel %vm1165, %v1368, %v1778
      %v1811 = vsel %vm1165, %v1383, %v1779
      %v1812 = vsel %vm1165, %v1398, %v1780
      %v1813 = vsel %vm1165, %v1413, %v1781
      %v1814 = vsel %vm1165, %v1428, %v1782
      %v1815 = vsel %vm1165, %v1443, %v1783
      %v1816 = vsel %vm1165, %v1458, %v1784
      %v1817 = vsel %vm1165, %v1473, %v1785
      %v1818 = vsel %vm1165, %v1488, %v1786
      %v1819 = vsel %vm1165, %v1503, %v1787
      %v1820 = vsel %vm1165, %v1518, %v1788
      %v1821 = vsel %vm1165, %v1533, %v1789
      %v1822 = vsel %vm1165, %v1548, %v1790
      %v1823 = vsel %vm1165, %v1563, %v1791
      %v1824 = vsel %vm1165, %v1578, %v1792
      %v1825 = vsel %vm1165, %v1593, %v1793
      %v1826 = vsel %vm1165, %v1608, %v1794
      %v1827 = vsel %vm1165, %v1623, %v1795
      %v1828 = vsel %vm1165, %v1638, %v1796
      %v1829 = vsel %vm1165, %v1653, %v1797
      %v1830 = vsel %vm1165, %v1668, %v1798
      %v1831 = vsel %vm1165, %v1683, %v1799
      %v1832 = vsel %vm1165, %v1698, %v1800
      %v1833 = vsel %vm1165, %v1713, %v1801
      %v1834 = vsel %vm1165, %v1728, %v1802
      %v1835 = vsel %vm1165, %v1743, %v1803
      %v1836 = vsel %vm1165, %v1758, %v1804
      %v1837 = vsel %vm1165, %v1773, %v1805
      %v1838 = vld [vmem:[%s212] sm:$0xff]
      %v1839 = vld [vmem:[%s212 + $0x8] sm:$0xff]
      %v1840 = vld [vmem:[%s212 + $0x10] sm:$0xff]
      %v1841 = vld [vmem:[%s212 + $0x18] sm:$0xff]
      %v1842 = vld [vmem:[%s212 + $0x20] sm:$0xff]
      %v1843 = vld [vmem:[%s212 + $0x28] sm:$0xff]
      %v1844 = vld [vmem:[%s212 + $0x30] sm:$0xff]
      %v1845 = vld [vmem:[%s212 + $0x38] sm:$0xff]
      %v1846 = vld [vmem:[%s212 + $0x40] sm:$0xff]
      %v1847 = vld [vmem:[%s212 + $0x48] sm:$0xff]
      %v1848 = vld [vmem:[%s212 + $0x50] sm:$0xff]
      %v1849 = vld [vmem:[%s212 + $0x58] sm:$0xff]
      %v1850 = vld [vmem:[%s212 + $0x60] sm:$0xff]
      %v1851 = vld [vmem:[%s212 + $0x68] sm:$0xff]
      %v1852 = vld [vmem:[%s212 + $0x70] sm:$0xff]
      %v1853 = vld [vmem:[%s212 + $0x78] sm:$0xff]
      %v1854 = vld [vmem:[%s212 + $0x80] sm:$0xff]
      %v1855 = vld [vmem:[%s212 + $0x88] sm:$0xff]
      %v1856 = vld [vmem:[%s212 + $0x90] sm:$0xff]
      %v1857 = vld [vmem:[%s212 + $0x98] sm:$0xff]
      %v1858 = vld [vmem:[%s212 + $0xa0] sm:$0xff]
      %v1859 = vld [vmem:[%s212 + $0xa8] sm:$0xff]
      %v1860 = vld [vmem:[%s212 + $0xb0] sm:$0xff]
      %v1861 = vld [vmem:[%s212 + $0xb8] sm:$0xff]
      %v1862 = vld [vmem:[%s212 + $0xc0] sm:$0xff]
      %v1863 = vld [vmem:[%s212 + $0xc8] sm:$0xff]
      %v1864 = vld [vmem:[%s212 + $0xd0] sm:$0xff]
      %v1865 = vld [vmem:[%s212 + $0xd8] sm:$0xff]
      %v1866 = vld [vmem:[%s212 + $0xe0] sm:$0xff]
      %v1867 = vld [vmem:[%s212 + $0xe8] sm:$0xff]
      %v1868 = vld [vmem:[%s212 + $0xf0] sm:$0xff]
      %v1869 = vld [vmem:[%s212 + $0xf8] sm:$0xff]
      %1902 = vrot.lane.b32.xlu0 %v1838, 32
      %v1903 = vpop.permute.xlu0 %1902
      %1904 = vrot.lane.b32.xlu0 %v1839, 32
      %v1905 = vpop.permute.xlu0 %1904
      %1906 = vrot.lane.b32.xlu0 %v1840, 32
      %v1907 = vpop.permute.xlu0 %1906
      %1908 = vrot.lane.b32.xlu0 %v1841, 32
      %v1909 = vpop.permute.xlu0 %1908
      %1910 = vrot.lane.b32.xlu0 %v1842, 32
      %v1911 = vpop.permute.xlu0 %1910
      %1912 = vrot.lane.b32.xlu0 %v1843, 32
      %v1913 = vpop.permute.xlu0 %1912
      %1914 = vrot.lane.b32.xlu0 %v1844, 32
      %v1915 = vpop.permute.xlu0 %1914
      %1916 = vrot.lane.b32.xlu0 %v1845, 32
      %v1917 = vpop.permute.xlu0 %1916
      %1918 = vrot.lane.b32.xlu0 %v1846, 32
      %v1919 = vpop.permute.xlu0 %1918
      %1920 = vrot.lane.b32.xlu0 %v1847, 32
      %v1921 = vpop.permute.xlu0 %1920
      %1922 = vrot.lane.b32.xlu0 %v1848, 32
      %v1923 = vpop.permute.xlu0 %1922
      %1924 = vrot.lane.b32.xlu0 %v1849, 32
      %v1925 = vpop.permute.xlu0 %1924
      %1926 = vrot.lane.b32.xlu0 %v1850, 32
      %v1927 = vpop.permute.xlu0 %1926
      %1928 = vrot.lane.b32.xlu0 %v1851, 32
      %v1929 = vpop.permute.xlu0 %1928
      %1930 = vrot.lane.b32.xlu0 %v1852, 32
      %v1931 = vpop.permute.xlu0 %1930
      %1932 = vrot.lane.b32.xlu0 %v1853, 32
      %v1933 = vpop.permute.xlu0 %1932
      %1934 = vrot.lane.b32.xlu0 %v1854, 32
      %v1935 = vpop.permute.xlu0 %1934
      %1936 = vrot.lane.b32.xlu0 %v1855, 32
      %v1937 = vpop.permute.xlu0 %1936
      %1938 = vrot.lane.b32.xlu0 %v1856, 32
      %v1939 = vpop.permute.xlu0 %1938
      %1940 = vrot.lane.b32.xlu0 %v1857, 32
      %v1941 = vpop.permute.xlu0 %1940
      %1942 = vrot.lane.b32.xlu0 %v1858, 32
      %v1943 = vpop.permute.xlu0 %1942
      %1944 = vrot.lane.b32.xlu0 %v1859, 32
      %v1945 = vpop.permute.xlu0 %1944
      %1946 = vrot.lane.b32.xlu0 %v1860, 32
      %v1947 = vpop.permute.xlu0 %1946
      %1948 = vrot.lane.b32.xlu0 %v1861, 32
      %v1949 = vpop.permute.xlu0 %1948
      %1950 = vrot.lane.b32.xlu0 %v1862, 32
      %v1951 = vpop.permute.xlu0 %1950
      %1952 = vrot.lane.b32.xlu0 %v1863, 32
      %v1953 = vpop.permute.xlu0 %1952
      %1954 = vrot.lane.b32.xlu0 %v1864, 32
      %v1955 = vpop.permute.xlu0 %1954
      %1956 = vrot.lane.b32.xlu0 %v1865, 32
      %v1957 = vpop.permute.xlu0 %1956
      %1958 = vrot.lane.b32.xlu0 %v1866, 32
      %v1959 = vpop.permute.xlu0 %1958
      %1960 = vrot.lane.b32.xlu0 %v1867, 32
      %v1961 = vpop.permute.xlu0 %1960
      %1962 = vrot.lane.b32.xlu0 %v1868, 32
      %v1963 = vpop.permute.xlu0 %1962
      %1964 = vrot.lane.b32.xlu0 %v1869, 32
      %v1965 = vpop.permute.xlu0 %1964
      %v1998 = vmul.f32 %v1806, %v1903
      %v1999 = vmul.f32 %v1807, %v1905
      %v2000 = vmul.f32 %v1808, %v1907
      %v2001 = vmul.f32 %v1809, %v1909
      %v2002 = vmul.f32 %v1810, %v1911
      %v2003 = vmul.f32 %v1811, %v1913
      %v2004 = vmul.f32 %v1812, %v1915
      %v2005 = vmul.f32 %v1813, %v1917
      %v2006 = vmul.f32 %v1814, %v1919
      %v2007 = vmul.f32 %v1815, %v1921
      %v2008 = vmul.f32 %v1816, %v1923
      %v2009 = vmul.f32 %v1817, %v1925
      %v2010 = vmul.f32 %v1818, %v1927
      %v2011 = vmul.f32 %v1819, %v1929
      %v2012 = vmul.f32 %v1820, %v1931
      %v2013 = vmul.f32 %v1821, %v1933
      %v2014 = vmul.f32 %v1822, %v1935
      %v2015 = vmul.f32 %v1823, %v1937
      %v2016 = vmul.f32 %v1824, %v1939
      %v2017 = vmul.f32 %v1825, %v1941
      %v2018 = vmul.f32 %v1826, %v1943
      %v2019 = vmul.f32 %v1827, %v1945
      %v2020 = vmul.f32 %v1828, %v1947
      %v2021 = vmul.f32 %v1829, %v1949
      %v2022 = vmul.f32 %v1830, %v1951
      %v2023 = vmul.f32 %v1831, %v1953
      %v2024 = vmul.f32 %v1832, %v1955
      %v2025 = vmul.f32 %v1833, %v1957
      %v2026 = vmul.f32 %v1834, %v1959
      %v2027 = vmul.f32 %v1835, %v1961
      %v2028 = vmul.f32 %v1836, %v1963
      %v2029 = vmul.f32 %v1837, %v1965
      %2062 = vrot.lane.b32.xlu0 %v1806, 32
      %v2063 = vpop.permute.xlu0 %2062
      %2064 = vrot.lane.b32.xlu0 %v1807, 32
      %v2065 = vpop.permute.xlu0 %2064
      %2066 = vrot.lane.b32.xlu0 %v1808, 32
      %v2067 = vpop.permute.xlu0 %2066
      %2068 = vrot.lane.b32.xlu0 %v1809, 32
      %v2069 = vpop.permute.xlu0 %2068
      %2070 = vrot.lane.b32.xlu0 %v1810, 32
      %v2071 = vpop.permute.xlu0 %2070
      %2072 = vrot.lane.b32.xlu0 %v1811, 32
      %v2073 = vpop.permute.xlu0 %2072
      %2074 = vrot.lane.b32.xlu0 %v1812, 32
      %v2075 = vpop.permute.xlu0 %2074
      %2076 = vrot.lane.b32.xlu0 %v1813, 32
      %v2077 = vpop.permute.xlu0 %2076
      %2078 = vrot.lane.b32.xlu0 %v1814, 32
      %v2079 = vpop.permute.xlu0 %2078
      %2080 = vrot.lane.b32.xlu0 %v1815, 32
      %v2081 = vpop.permute.xlu0 %2080
      %2082 = vrot.lane.b32.xlu0 %v1816, 32
      %v2083 = vpop.permute.xlu0 %2082
      %2084 = vrot.lane.b32.xlu0 %v1817, 32
      %v2085 = vpop.permute.xlu0 %2084
      %2086 = vrot.lane.b32.xlu0 %v1818, 32
      %v2087 = vpop.permute.xlu0 %2086
      %2088 = vrot.lane.b32.xlu0 %v1819, 32
      %v2089 = vpop.permute.xlu0 %2088
      %2090 = vrot.lane.b32.xlu0 %v1820, 32
      %v2091 = vpop.permute.xlu0 %2090
      %2092 = vrot.lane.b32.xlu0 %v1821, 32
      %v2093 = vpop.permute.xlu0 %2092
      %2094 = vrot.lane.b32.xlu0 %v1822, 32
      %v2095 = vpop.permute.xlu0 %2094
      %2096 = vrot.lane.b32.xlu0 %v1823, 32
      %v2097 = vpop.permute.xlu0 %2096
      %2098 = vrot.lane.b32.xlu0 %v1824, 32
      %v2099 = vpop.permute.xlu0 %2098
      %2100 = vrot.lane.b32.xlu0 %v1825, 32
      %v2101 = vpop.permute.xlu0 %2100
      %2102 = vrot.lane.b32.xlu0 %v1826, 32
      %v2103 = vpop.permute.xlu0 %2102
      %2104 = vrot.lane.b32.xlu0 %v1827, 32
      %v2105 = vpop.permute.xlu0 %2104
      %2106 = vrot.lane.b32.xlu0 %v1828, 32
      %v2107 = vpop.permute.xlu0 %2106
      %2108 = vrot.lane.b32.xlu0 %v1829, 32
      %v2109 = vpop.permute.xlu0 %2108
      %2110 = vrot.lane.b32.xlu0 %v1830, 32
      %v2111 = vpop.permute.xlu0 %2110
      %2112 = vrot.lane.b32.xlu0 %v1831, 32
      %v2113 = vpop.permute.xlu0 %2112
      %2114 = vrot.lane.b32.xlu0 %v1832, 32
      %v2115 = vpop.permute.xlu0 %2114
      %2116 = vrot.lane.b32.xlu0 %v1833, 32
      %v2117 = vpop.permute.xlu0 %2116
      %2118 = vrot.lane.b32.xlu0 %v1834, 32
      %v2119 = vpop.permute.xlu0 %2118
      %2120 = vrot.lane.b32.xlu0 %v1835, 32
      %v2121 = vpop.permute.xlu0 %2120
      %2122 = vrot.lane.b32.xlu0 %v1836, 32
      %v2123 = vpop.permute.xlu0 %2122
      %2124 = vrot.lane.b32.xlu0 %v1837, 32
      %v2125 = vpop.permute.xlu0 %2124
      %v2158 = vmul.f32 %v1806, %v2063
      %v2159 = vmul.f32 %v1807, %v2065
      %v2160 = vmul.f32 %v1808, %v2067
      %v2161 = vmul.f32 %v1809, %v2069
      %v2162 = vmul.f32 %v1810, %v2071
      %v2163 = vmul.f32 %v1811, %v2073
      %v2164 = vmul.f32 %v1812, %v2075
      %v2165 = vmul.f32 %v1813, %v2077
      %v2166 = vmul.f32 %v1814, %v2079
      %v2167 = vmul.f32 %v1815, %v2081
      %v2168 = vmul.f32 %v1816, %v2083
      %v2169 = vmul.f32 %v1817, %v2085
      %v2170 = vmul.f32 %v1818, %v2087
      %v2171 = vmul.f32 %v1819, %v2089
      %v2172 = vmul.f32 %v1820, %v2091
      %v2173 = vmul.f32 %v1821, %v2093
      %v2174 = vmul.f32 %v1822, %v2095
      %v2175 = vmul.f32 %v1823, %v2097
      %v2176 = vmul.f32 %v1824, %v2099
      %v2177 = vmul.f32 %v1825, %v2101
      %v2178 = vmul.f32 %v1826, %v2103
      %v2179 = vmul.f32 %v1827, %v2105
      %v2180 = vmul.f32 %v1828, %v2107
      %v2181 = vmul.f32 %v1829, %v2109
      %v2182 = vmul.f32 %v1830, %v2111
      %v2183 = vmul.f32 %v1831, %v2113
      %v2184 = vmul.f32 %v1832, %v2115
      %v2185 = vmul.f32 %v1833, %v2117
      %v2186 = vmul.f32 %v1834, %v2119
      %v2187 = vmul.f32 %v1835, %v2121
      %v2188 = vmul.f32 %v1836, %v2123
      %v2189 = vmul.f32 %v1837, %v2125
      %2222 = vrot.lane.b32.xlu0 %v2158, 32
      %v2223 = vpop.permute.xlu0 %2222
      %2224 = vrot.lane.b32.xlu0 %v2159, 32
      %v2225 = vpop.permute.xlu0 %2224
      %2226 = vrot.lane.b32.xlu0 %v2160, 32
      %v2227 = vpop.permute.xlu0 %2226
      %2228 = vrot.lane.b32.xlu0 %v2161, 32
      %v2229 = vpop.permute.xlu0 %2228
      %2230 = vrot.lane.b32.xlu0 %v2162, 32
      %v2231 = vpop.permute.xlu0 %2230
      %2232 = vrot.lane.b32.xlu0 %v2163, 32
      %v2233 = vpop.permute.xlu0 %2232
      %2234 = vrot.lane.b32.xlu0 %v2164, 32
      %v2235 = vpop.permute.xlu0 %2234
      %2236 = vrot.lane.b32.xlu0 %v2165, 32
      %v2237 = vpop.permute.xlu0 %2236
      %2238 = vrot.lane.b32.xlu0 %v2166, 32
      %v2239 = vpop.permute.xlu0 %2238
      %2240 = vrot.lane.b32.xlu0 %v2167, 32
      %v2241 = vpop.permute.xlu0 %2240
      %2242 = vrot.lane.b32.xlu0 %v2168, 32
      %v2243 = vpop.permute.xlu0 %2242
      %2244 = vrot.lane.b32.xlu0 %v2169, 32
      %v2245 = vpop.permute.xlu0 %2244
      %2246 = vrot.lane.b32.xlu0 %v2170, 32
      %v2247 = vpop.permute.xlu0 %2246
      %2248 = vrot.lane.b32.xlu0 %v2171, 32
      %v2249 = vpop.permute.xlu0 %2248
      %2250 = vrot.lane.b32.xlu0 %v2172, 32
      %v2251 = vpop.permute.xlu0 %2250
      %2252 = vrot.lane.b32.xlu0 %v2173, 32
      %v2253 = vpop.permute.xlu0 %2252
      %2254 = vrot.lane.b32.xlu0 %v2174, 32
      %v2255 = vpop.permute.xlu0 %2254
      %2256 = vrot.lane.b32.xlu0 %v2175, 32
      %v2257 = vpop.permute.xlu0 %2256
      %2258 = vrot.lane.b32.xlu0 %v2176, 32
      %v2259 = vpop.permute.xlu0 %2258
      %2260 = vrot.lane.b32.xlu0 %v2177, 32
      %v2261 = vpop.permute.xlu0 %2260
      %2262 = vrot.lane.b32.xlu0 %v2178, 32
      %v2263 = vpop.permute.xlu0 %2262
      %2264 = vrot.lane.b32.xlu0 %v2179, 32
      %v2265 = vpop.permute.xlu0 %2264
      %2266 = vrot.lane.b32.xlu0 %v2180, 32
      %v2267 = vpop.permute.xlu0 %2266
      %2268 = vrot.lane.b32.xlu0 %v2181, 32
      %v2269 = vpop.permute.xlu0 %2268
      %2270 = vrot.lane.b32.xlu0 %v2182, 32
      %v2271 = vpop.permute.xlu0 %2270
      %2272 = vrot.lane.b32.xlu0 %v2183, 32
      %v2273 = vpop.permute.xlu0 %2272
      %2274 = vrot.lane.b32.xlu0 %v2184, 32
      %v2275 = vpop.permute.xlu0 %2274
      %2276 = vrot.lane.b32.xlu0 %v2185, 32
      %v2277 = vpop.permute.xlu0 %2276
      %2278 = vrot.lane.b32.xlu0 %v2186, 32
      %v2279 = vpop.permute.xlu0 %2278
      %2280 = vrot.lane.b32.xlu0 %v2187, 32
      %v2281 = vpop.permute.xlu0 %2280
      %2282 = vrot.lane.b32.xlu0 %v2188, 32
      %v2283 = vpop.permute.xlu0 %2282
      %2284 = vrot.lane.b32.xlu0 %v2189, 32
      %v2285 = vpop.permute.xlu0 %2284
      %v2318 = vadd.f32 %v1998, %v2223
      %v2319 = vadd.f32 %v1999, %v2225
      %v2320 = vadd.f32 %v2000, %v2227
      %v2321 = vadd.f32 %v2001, %v2229
      %v2322 = vadd.f32 %v2002, %v2231
      %v2323 = vadd.f32 %v2003, %v2233
      %v2324 = vadd.f32 %v2004, %v2235
      %v2325 = vadd.f32 %v2005, %v2237
      %v2326 = vadd.f32 %v2006, %v2239
      %v2327 = vadd.f32 %v2007, %v2241
      %v2328 = vadd.f32 %v2008, %v2243
      %v2329 = vadd.f32 %v2009, %v2245
      %v2330 = vadd.f32 %v2010, %v2247
      %v2331 = vadd.f32 %v2011, %v2249
      %v2332 = vadd.f32 %v2012, %v2251
      %v2333 = vadd.f32 %v2013, %v2253
      %v2334 = vadd.f32 %v2014, %v2255
      %v2335 = vadd.f32 %v2015, %v2257
      %v2336 = vadd.f32 %v2016, %v2259
      %v2337 = vadd.f32 %v2017, %v2261
      %v2338 = vadd.f32 %v2018, %v2263
      %v2339 = vadd.f32 %v2019, %v2265
      %v2340 = vadd.f32 %v2020, %v2267
      %v2341 = vadd.f32 %v2021, %v2269
      %v2342 = vadd.f32 %v2022, %v2271
      %v2343 = vadd.f32 %v2023, %v2273
      %v2344 = vadd.f32 %v2024, %v2275
      %v2345 = vadd.f32 %v2025, %v2277
      %v2346 = vadd.f32 %v2026, %v2279
      %v2347 = vadd.f32 %v2027, %v2281
      %v2348 = vadd.f32 %v2028, %v2283
      %v2349 = vadd.f32 %v2029, %v2285
      %v2350 = vtanh.pop %v2318
      %v2351 = vtanh.pop %v2319
      %v2352 = vtanh.pop %v2320
      %v2353 = vtanh.pop %v2321
      %v2354 = vtanh.pop %v2322
      %v2355 = vtanh.pop %v2323
      %v2356 = vtanh.pop %v2324
      %v2357 = vtanh.pop %v2325
      %v2358 = vtanh.pop %v2326
      %v2359 = vtanh.pop %v2327
      %v2360 = vtanh.pop %v2328
      %v2361 = vtanh.pop %v2329
      %v2362 = vtanh.pop %v2330
      %v2363 = vtanh.pop %v2331
      %v2364 = vtanh.pop %v2332
      %v2365 = vtanh.pop %v2333
      %v2366 = vtanh.pop %v2334
      %v2367 = vtanh.pop %v2335
      %v2368 = vtanh.pop %v2336
      %v2369 = vtanh.pop %v2337
      %v2370 = vtanh.pop %v2338
      %v2371 = vtanh.pop %v2339
      %v2372 = vtanh.pop %v2340
      %v2373 = vtanh.pop %v2341
      %v2374 = vtanh.pop %v2342
      %v2375 = vtanh.pop %v2343
      %v2376 = vtanh.pop %v2344
      %v2377 = vtanh.pop %v2345
      %v2378 = vtanh.pop %v2346
      %v2379 = vtanh.pop %v2347
      %v2380 = vtanh.pop %v2348
      %v2381 = vtanh.pop %v2349
      %2414 = vrot.lane.b32.xlu0 %v2350, 32
      %v2415 = vpop.permute.xlu0 %2414
      %2416 = vrot.lane.b32.xlu0 %v2351, 32
      %v2417 = vpop.permute.xlu0 %2416
      %2418 = vrot.lane.b32.xlu0 %v2352, 32
      %v2419 = vpop.permute.xlu0 %2418
      %2420 = vrot.lane.b32.xlu0 %v2353, 32
      %v2421 = vpop.permute.xlu0 %2420
      %2422 = vrot.lane.b32.xlu0 %v2354, 32
      %v2423 = vpop.permute.xlu0 %2422
      %2424 = vrot.lane.b32.xlu0 %v2355, 32
      %v2425 = vpop.permute.xlu0 %2424
      %2426 = vrot.lane.b32.xlu0 %v2356, 32
      %v2427 = vpop.permute.xlu0 %2426
      %2428 = vrot.lane.b32.xlu0 %v2357, 32
      %v2429 = vpop.permute.xlu0 %2428
      %2430 = vrot.lane.b32.xlu0 %v2358, 32
      %v2431 = vpop.permute.xlu0 %2430
      %2432 = vrot.lane.b32.xlu0 %v2359, 32
      %v2433 = vpop.permute.xlu0 %2432
      %2434 = vrot.lane.b32.xlu0 %v2360, 32
      %v2435 = vpop.permute.xlu0 %2434
      %2436 = vrot.lane.b32.xlu0 %v2361, 32
      %v2437 = vpop.permute.xlu0 %2436
      %2438 = vrot.lane.b32.xlu0 %v2362, 32
      %v2439 = vpop.permute.xlu0 %2438
      %2440 = vrot.lane.b32.xlu0 %v2363, 32
      %v2441 = vpop.permute.xlu0 %2440
      %2442 = vrot.lane.b32.xlu0 %v2364, 32
      %v2443 = vpop.permute.xlu0 %2442
      %2444 = vrot.lane.b32.xlu0 %v2365, 32
      %v2445 = vpop.permute.xlu0 %2444
      %2446 = vrot.lane.b32.xlu0 %v2366, 32
      %v2447 = vpop.permute.xlu0 %2446
      %2448 = vrot.lane.b32.xlu0 %v2367, 32
      %v2449 = vpop.permute.xlu0 %2448
      %2450 = vrot.lane.b32.xlu0 %v2368, 32
      %v2451 = vpop.permute.xlu0 %2450
      %2452 = vrot.lane.b32.xlu0 %v2369, 32
      %v2453 = vpop.permute.xlu0 %2452
      %2454 = vrot.lane.b32.xlu0 %v2370, 32
      %v2455 = vpop.permute.xlu0 %2454
      %2456 = vrot.lane.b32.xlu0 %v2371, 32
      %v2457 = vpop.permute.xlu0 %2456
      %2458 = vrot.lane.b32.xlu0 %v2372, 32
      %v2459 = vpop.permute.xlu0 %2458
      %2460 = vrot.lane.b32.xlu0 %v2373, 32
      %v2461 = vpop.permute.xlu0 %2460
      %2462 = vrot.lane.b32.xlu0 %v2374, 32
      %v2463 = vpop.permute.xlu0 %2462
      %2464 = vrot.lane.b32.xlu0 %v2375, 32
      %v2465 = vpop.permute.xlu0 %2464
      %2466 = vrot.lane.b32.xlu0 %v2376, 32
      %v2467 = vpop.permute.xlu0 %2466
      %2468 = vrot.lane.b32.xlu0 %v2377, 32
      %v2469 = vpop.permute.xlu0 %2468
      %2470 = vrot.lane.b32.xlu0 %v2378, 32
      %v2471 = vpop.permute.xlu0 %2470
      %2472 = vrot.lane.b32.xlu0 %v2379, 32
      %v2473 = vpop.permute.xlu0 %2472
      %2474 = vrot.lane.b32.xlu0 %v2380, 32
      %v2475 = vpop.permute.xlu0 %2474
      %2476 = vrot.lane.b32.xlu0 %v2381, 32
      %v2477 = vpop.permute.xlu0 %2476
      %v2510 = vmul.f32 %v1806, %v2415
      %v2511 = vmul.f32 %v1807, %v2417
      %v2512 = vmul.f32 %v1808, %v2419
      %v2513 = vmul.f32 %v1809, %v2421
      %v2514 = vmul.f32 %v1810, %v2423
      %v2515 = vmul.f32 %v1811, %v2425
      %v2516 = vmul.f32 %v1812, %v2427
      %v2517 = vmul.f32 %v1813, %v2429
      %v2518 = vmul.f32 %v1814, %v2431
      %v2519 = vmul.f32 %v1815, %v2433
      %v2520 = vmul.f32 %v1816, %v2435
      %v2521 = vmul.f32 %v1817, %v2437
      %v2522 = vmul.f32 %v1818, %v2439
      %v2523 = vmul.f32 %v1819, %v2441
      %v2524 = vmul.f32 %v1820, %v2443
      %v2525 = vmul.f32 %v1821, %v2445
      %v2526 = vmul.f32 %v1822, %v2447
      %v2527 = vmul.f32 %v1823, %v2449
      %v2528 = vmul.f32 %v1824, %v2451
      %v2529 = vmul.f32 %v1825, %v2453
      %v2530 = vmul.f32 %v1826, %v2455
      %v2531 = vmul.f32 %v1827, %v2457
      %v2532 = vmul.f32 %v1828, %v2459
      %v2533 = vmul.f32 %v1829, %v2461
      %v2534 = vmul.f32 %v1830, %v2463
      %v2535 = vmul.f32 %v1831, %v2465
      %v2536 = vmul.f32 %v1832, %v2467
      %v2537 = vmul.f32 %v1833, %v2469
      %v2538 = vmul.f32 %v1834, %v2471
      %v2539 = vmul.f32 %v1835, %v2473
      %v2540 = vmul.f32 %v1836, %v2475
      %v2541 = vmul.f32 %v1837, %v2477
      %2574 = vrot.lane.b32.xlu0 %v2510, 64
      %v2575 = vpop.permute.xlu0 %2574
      %2576 = vrot.lane.b32.xlu0 %v2511, 64
      %v2577 = vpop.permute.xlu0 %2576
      %2578 = vrot.lane.b32.xlu0 %v2512, 64
      %v2579 = vpop.permute.xlu0 %2578
      %2580 = vrot.lane.b32.xlu0 %v2513, 64
      %v2581 = vpop.permute.xlu0 %2580
      %2582 = vrot.lane.b32.xlu0 %v2514, 64
      %v2583 = vpop.permute.xlu0 %2582
      %2584 = vrot.lane.b32.xlu0 %v2515, 64
      %v2585 = vpop.permute.xlu0 %2584
      %2586 = vrot.lane.b32.xlu0 %v2516, 64
      %v2587 = vpop.permute.xlu0 %2586
      %2588 = vrot.lane.b32.xlu0 %v2517, 64
      %v2589 = vpop.permute.xlu0 %2588
      %2590 = vrot.lane.b32.xlu0 %v2518, 64
      %v2591 = vpop.permute.xlu0 %2590
      %2592 = vrot.lane.b32.xlu0 %v2519, 64
      %v2593 = vpop.permute.xlu0 %2592
      %2594 = vrot.lane.b32.xlu0 %v2520, 64
      %v2595 = vpop.permute.xlu0 %2594
      %2596 = vrot.lane.b32.xlu0 %v2521, 64
      %v2597 = vpop.permute.xlu0 %2596
      %2598 = vrot.lane.b32.xlu0 %v2522, 64
      %v2599 = vpop.permute.xlu0 %2598
      %2600 = vrot.lane.b32.xlu0 %v2523, 64
      %v2601 = vpop.permute.xlu0 %2600
      %2602 = vrot.lane.b32.xlu0 %v2524, 64
      %v2603 = vpop.permute.xlu0 %2602
      %2604 = vrot.lane.b32.xlu0 %v2525, 64
      %v2605 = vpop.permute.xlu0 %2604
      %2606 = vrot.lane.b32.xlu0 %v2526, 64
      %v2607 = vpop.permute.xlu0 %2606
      %2608 = vrot.lane.b32.xlu0 %v2527, 64
      %v2609 = vpop.permute.xlu0 %2608
      %2610 = vrot.lane.b32.xlu0 %v2528, 64
      %v2611 = vpop.permute.xlu0 %2610
      %2612 = vrot.lane.b32.xlu0 %v2529, 64
      %v2613 = vpop.permute.xlu0 %2612
      %2614 = vrot.lane.b32.xlu0 %v2530, 64
      %v2615 = vpop.permute.xlu0 %2614
      %2616 = vrot.lane.b32.xlu0 %v2531, 64
      %v2617 = vpop.permute.xlu0 %2616
      %2618 = vrot.lane.b32.xlu0 %v2532, 64
      %v2619 = vpop.permute.xlu0 %2618
      %2620 = vrot.lane.b32.xlu0 %v2533, 64
      %v2621 = vpop.permute.xlu0 %2620
      %2622 = vrot.lane.b32.xlu0 %v2534, 64
      %v2623 = vpop.permute.xlu0 %2622
      %2624 = vrot.lane.b32.xlu0 %v2535, 64
      %v2625 = vpop.permute.xlu0 %2624
      %2626 = vrot.lane.b32.xlu0 %v2536, 64
      %v2627 = vpop.permute.xlu0 %2626
      %2628 = vrot.lane.b32.xlu0 %v2537, 64
      %v2629 = vpop.permute.xlu0 %2628
      %2630 = vrot.lane.b32.xlu0 %v2538, 64
      %v2631 = vpop.permute.xlu0 %2630
      %2632 = vrot.lane.b32.xlu0 %v2539, 64
      %v2633 = vpop.permute.xlu0 %2632
      %2634 = vrot.lane.b32.xlu0 %v2540, 64
      %v2635 = vpop.permute.xlu0 %2634
      %2636 = vrot.lane.b32.xlu0 %v2541, 64
      %v2637 = vpop.permute.xlu0 %2636
      %vm2670 = vcmask 261120
      %v2671 = vsel %vm2670, %v2575, %v2318
      %v2672 = vsel %vm2670, %v2577, %v2319
      %v2673 = vsel %vm2670, %v2579, %v2320
      %v2674 = vsel %vm2670, %v2581, %v2321
      %v2675 = vsel %vm2670, %v2583, %v2322
      %v2676 = vsel %vm2670, %v2585, %v2323
      %v2677 = vsel %vm2670, %v2587, %v2324
      %v2678 = vsel %vm2670, %v2589, %v2325
      %v2679 = vsel %vm2670, %v2591, %v2326
      %v2680 = vsel %vm2670, %v2593, %v2327
      %v2681 = vsel %vm2670, %v2595, %v2328
      %v2682 = vsel %vm2670, %v2597, %v2329
      %v2683 = vsel %vm2670, %v2599, %v2330
      %v2684 = vsel %vm2670, %v2601, %v2331
      %v2685 = vsel %vm2670, %v2603, %v2332
      %v2686 = vsel %vm2670, %v2605, %v2333
      %v2687 = vsel %vm2670, %v2607, %v2334
      %v2688 = vsel %vm2670, %v2609, %v2335
      %v2689 = vsel %vm2670, %v2611, %v2336
      %v2690 = vsel %vm2670, %v2613, %v2337
      %v2691 = vsel %vm2670, %v2615, %v2338
      %v2692 = vsel %vm2670, %v2617, %v2339
      %v2693 = vsel %vm2670, %v2619, %v2340
      %v2694 = vsel %vm2670, %v2621, %v2341
      %v2695 = vsel %vm2670, %v2623, %v2342
      %v2696 = vsel %vm2670, %v2625, %v2343
      %v2697 = vsel %vm2670, %v2627, %v2344
      %v2698 = vsel %vm2670, %v2629, %v2345
      %v2699 = vsel %vm2670, %v2631, %v2346
      %v2700 = vsel %vm2670, %v2633, %v2347
      %v2701 = vsel %vm2670, %v2635, %v2348
      %v2702 = vsel %vm2670, %v2637, %v2349
      %vm2703 = vcmask 523264
      %2704 = vst.msk [vmem:[%s217] sm:$0xff] %vm2703, %v2671
      %2705 = vst.msk [vmem:[%s217 + $0x8] sm:$0xff] %vm2703, %v2672
      %2706 = vst.msk [vmem:[%s217 + $0x10] sm:$0xff] %vm2703, %v2673
      %2707 = vst.msk [vmem:[%s217 + $0x18] sm:$0xff] %vm2703, %v2674
      %2708 = vst.msk [vmem:[%s217 + $0x20] sm:$0xff] %vm2703, %v2675
      %2709 = vst.msk [vmem:[%s217 + $0x28] sm:$0xff] %vm2703, %v2676
      %2710 = vst.msk [vmem:[%s217 + $0x30] sm:$0xff] %vm2703, %v2677
      %2711 = vst.msk [vmem:[%s217 + $0x38] sm:$0xff] %vm2703, %v2678
      %2712 = vst.msk [vmem:[%s217 + $0x40] sm:$0xff] %vm2703, %v2679
      %2713 = vst.msk [vmem:[%s217 + $0x48] sm:$0xff] %vm2703, %v2680
      %2714 = vst.msk [vmem:[%s217 + $0x50] sm:$0xff] %vm2703, %v2681
      %2715 = vst.msk [vmem:[%s217 + $0x58] sm:$0xff] %vm2703, %v2682
      %2716 = vst.msk [vmem:[%s217 + $0x60] sm:$0xff] %vm2703, %v2683
      %2717 = vst.msk [vmem:[%s217 + $0x68] sm:$0xff] %vm2703, %v2684
      %2718 = vst.msk [vmem:[%s217 + $0x70] sm:$0xff] %vm2703, %v2685
      %2719 = vst.msk [vmem:[%s217 + $0x78] sm:$0xff] %vm2703, %v2686
      %2720 = vst.msk [vmem:[%s217 + $0x80] sm:$0xff] %vm2703, %v2687
      %2721 = vst.msk [vmem:[%s217 + $0x88] sm:$0xff] %vm2703, %v2688
      %2722 = vst.msk [vmem:[%s217 + $0x90] sm:$0xff] %vm2703, %v2689
      %2723 = vst.msk [vmem:[%s217 + $0x98] sm:$0xff] %vm2703, %v2690
      %2724 = vst.msk [vmem:[%s217 + $0xa0] sm:$0xff] %vm2703, %v2691
      %2725 = vst.msk [vmem:[%s217 + $0xa8] sm:$0xff] %vm2703, %v2692
      %2726 = vst.msk [vmem:[%s217 + $0xb0] sm:$0xff] %vm2703, %v2693
      %2727 = vst.msk [vmem:[%s217 + $0xb8] sm:$0xff] %vm2703, %v2694
      %2728 = vst.msk [vmem:[%s217 + $0xc0] sm:$0xff] %vm2703, %v2695
      %2729 = vst.msk [vmem:[%s217 + $0xc8] sm:$0xff] %vm2703, %v2696
      %2730 = vst.msk [vmem:[%s217 + $0xd0] sm:$0xff] %vm2703, %v2697
      %2731 = vst.msk [vmem:[%s217 + $0xd8] sm:$0xff] %vm2703, %v2698
      %2732 = vst.msk [vmem:[%s217 + $0xe0] sm:$0xff] %vm2703, %v2699
      %2733 = vst.msk [vmem:[%s217 + $0xe8] sm:$0xff] %vm2703, %v2700
      %2734 = vst.msk [vmem:[%s217 + $0xf0] sm:$0xff] %vm2703, %v2701
      %2735 = vst.msk [vmem:[%s217 + $0xf8] sm:$0xff] %vm2703, %v2702
      %p2736 = scmp.lt.s32.totalorder %s15, 1
      %s2737 = scalar_select %p2736, %s15, 1
      %s2738 = smul.addr %s2737, 32
      %s2739 = smul.addr %s2738, 8
      %s2740 = scalar_lea.vmem %s4, %s2739
      // Predicated region
      $region37: #{tpu_custom_call.1} parent=35 // pred_check
        %p2741 = pneg %p127
      $region38: #{tpu_custom_call.1} parent=35 // pred_check_branch
        %2743 = sbr.rel (%p2741) target = $region40
      $region39: #{tpu_custom_call.1} parent=35 // pred_region
        _
      $region40: #{tpu_custom_call.1} parent=35 // pred_fallthru
        _
    $region36: #{tpu_custom_call.1} parent=5 // pred_fallthru
      _
    %p2744 = scmp.le.s32.totalorder 2, %s10
    // Predicated region
    $region41: #{tpu_custom_call.1} parent=5 // pred_check
      %p2745 = pneg %p2744
    $region42: #{tpu_custom_call.1} parent=5 // pred_check_branch
      %2747 = sbr.rel (%p2745) target = $region44
    $region43: #{tpu_custom_call.1} parent=5 // pred_region
      %s2748 = ssub.s32 %s10, 2
      // Predicated region
      $region45: #{tpu_custom_call.1} parent=43 // pred_check
        %p2749 = pneg %p133
      $region46: #{tpu_custom_call.1} parent=43 // pred_check_branch
        %2751 = sbr.rel (%p2749) target = $region48
      $region47: #{tpu_custom_call.1} parent=43 // pred_region
        %p2752 = scmp.lt.s32.totalorder %s16, 1
        %s2753 = scalar_select %p2752, %s16, 1
        %s2754 = smul.addr %s2753, 32
        %s2755 = smul.addr %s2754, 8
        %s2756 = scalar_lea.vmem %s4, %s2755
      $region48: #{tpu_custom_call.1} parent=43 // pred_fallthru
        _
    $region44: #{tpu_custom_call.1} parent=5 // pred_fallthru
      _
  $region6: #{tpu_custom_call.1} parent=0 // loop_footer
    %s14 = sadd.s32 1, %s10
  $region7: #{tpu_custom_call.1} parent=0 // loop_footer_branch
    %9 = sbr.rel target = $region3
  $region8: #{tpu_custom_call.1} parent=0 // loop_exit
    _

</llo_original>
